<compile_context>
chip_gen: v7x
topology: tpu7x:2x2x1
jax: 0.10.0
libtpu: 0.0.40
codegen_flags: <defaults>
</compile_context>

<pallas_src>
import jax
import jax.numpy as jnp
from jax.experimental import pallas as pl
from jax.experimental.pallas import tpu as pltpu

NEG_SLOPE = 0.01            # nn.LeakyReLU default
MM_DTYPE = jnp.bfloat16     # MXU operand dtype; accumulation stays f32


def _round_up(v, m):
    return (v + m - 1) // m * m


def _leaky(x):
    return jnp.where(x >= 0, x, NEG_SLOPE * x)


def resblock_kernel(s2d_ref, wres_ref, wout_ref, bias_ref, o_ref,
                    rpad_ref, pres_ref, pout_ref, acc_ref):
    # s2d_ref : (1, Ho+1, Ws, 4*Cp) bf16  zero-padded space-to-depth of x:
    #             s2d[0, 1+i, 1+j, (2*dy+dx)*Cp + c] = x[n, 2i+dy, 2j+dx, c]
    #             row 0 / col 0 = the stride-2 conv's top/left padding;
    #             cols [Wo+1:Ws) are alignment padding (never read).
    # wres_ref: (9*Cp, Coutp) bf16  conv_res weights, rows match pres lane layout
    # wout_ref: (9*Cp, Coutp) bf16  conv_out weights, row block t=3*kh+kw = tap (kh,kw)
    # bias_ref: (1, Coutp)   f32    b_res + b_out (zero-padded to Coutp)
    # o_ref   : (1, HW, Coutp)      lane-dense flat output
    # rpad_ref: (Ho+2, Wp2, Cp)     zero-bordered pooled activations (scratch)
    # pres_ref/pout_ref: (HW, 9*Cp) im2col patch slabs, K on the lane axis (scratch)
    # acc_ref : (HW, Coutp) f32     shared accumulator for both convs (scratch)
    _, hp1, _, c4 = s2d_ref.shape
    Cp = c4 // 4
    Ho = hp1 - 1
    HW, Coutp = acc_ref.shape
    Wo = HW // Ho
    hp2, wp2, _ = rpad_ref.shape

    s2d = s2d_ref[0]                                     # (Ho+1, Ws, 4*Cp)

    # ---- conv_res: 3x3 / stride 2 / pad 1, all 9 taps packed on the lane (K) axis ----
    win = s2d[1:1 + Ho, 1:1 + Wo, :]                     # also the 2x2 pool windows
    pres_ref[:, 0:4 * Cp] = win.reshape(HW, 4 * Cp)                                      # taps (1,1),(1,2),(2,1),(2,2)
    pres_ref[:, 4 * Cp:6 * Cp] = s2d[0:Ho, 1:1 + Wo, 2 * Cp:4 * Cp].reshape(HW, 2 * Cp)  # taps (0,1),(0,2)
    pres_ref[:, 6 * Cp:7 * Cp] = s2d[1:1 + Ho, 0:Wo, Cp:2 * Cp].reshape(HW, Cp)          # tap  (1,0)
    pres_ref[:, 7 * Cp:8 * Cp] = s2d[1:1 + Ho, 0:Wo, 3 * Cp:4 * Cp].reshape(HW, Cp)      # tap  (2,0)
    pres_ref[:, 8 * Cp:9 * Cp] = s2d[0:Ho, 0:Wo, 3 * Cp:4 * Cp].reshape(HW, Cp)          # tap  (0,0)

    # single fat MXU pass; the store initializes the accumulator (no zero/broadcast pass)
    acc_ref[...] = jnp.dot(pres_ref[...], wres_ref[...],
                           preferred_element_type=jnp.float32)

    # ---- main path: leaky_relu -> maxpool(2x2) -> leaky_relu (dropouts = identity) ----
    a = _leaky(win)                                      # (Ho, Wo, 4*Cp)
    p = jnp.maximum(jnp.maximum(a[:, :, 0:Cp], a[:, :, Cp:2 * Cp]),
                    jnp.maximum(a[:, :, 2 * Cp:3 * Cp], a[:, :, 3 * Cp:4 * Cp]))
    r = _leaky(p).astype(rpad_ref.dtype)                 # (Ho, Wo, Cp)

    # zero only the border of rpad (thin stripes); interior fully overwritten each step.
    rpad_ref[0:1, :, :] = jnp.zeros((1, wp2, Cp), rpad_ref.dtype)
    rpad_ref[Ho + 1:Ho + 2, :, :] = jnp.zeros((1, wp2, Cp), rpad_ref.dtype)
    rpad_ref[:, 0:1, :] = jnp.zeros((hp2, 1, Cp), rpad_ref.dtype)
    rpad_ref[:, Wo + 1:wp2, :] = jnp.zeros((hp2, wp2 - (Wo + 1), Cp), rpad_ref.dtype)
    rpad_ref[1:Ho + 1, 1:Wo + 1, :] = r

    # ---- conv_out: 3x3 / stride 1 / pad 1, all 9 taps packed on the lane axis ----
    for kh in range(3):
        for kw in range(3):
            t = 3 * kh + kw
            pout_ref[:, t * Cp:(t + 1) * Cp] = (
                rpad_ref[kh:kh + Ho, kw:kw + Wo, :].reshape(HW, Cp))
    acc_ref[...] += jnp.dot(pout_ref[...], wout_ref[...],
                            preferred_element_type=jnp.float32)

    # bias (b_res + b_out) added once at the final, lane-dense store
    o_ref[0] = (acc_ref[...] + bias_ref[...]).astype(o_ref.dtype)


def resblock_forward(x_nchw, w_res, b_res, w_out, b_out):
    """x_nchw: (N, Cin, H, W) f32; conv weights/biases in torch Conv2d layout (OIHW / (Cout,))."""
    N, Cin, H, W = x_nchw.shape
    assert H % 2 == 0 and W % 2 == 0
    Ho, Wo = H // 2, W // 2
    HW = Ho * Wo
    Cout = w_res.shape[0]

    # alignment padding (review): Cin -> mult of 8, Cout -> mult of 128, W dims -> mult of 8
    Cp = _round_up(Cin, 8)
    Coutp = _round_up(Cout, 128)
    Ws = _round_up(Wo + 1, 8)       # sublane width of the s2d input block
    Wp2 = _round_up(Wo + 2, 8)      # sublane width of the rpad scratch

    # ---- layout glue (pure XLA): NCHW -> NHWC -> channel pad -> space-to-depth -> pad ----
    x = jnp.transpose(x_nchw, (0, 2, 3, 1))
    x = jnp.pad(x, ((0, 0), (0, 0), (0, 0), (0, Cp - Cin)))
    s2d = (x.reshape(N, Ho, 2, Wo, 2, Cp)
             .transpose(0, 1, 3, 2, 4, 5)
             .reshape(N, Ho, Wo, 4 * Cp))                # channel group index = 2*dy + dx
    s2d_pad = jnp.pad(s2d, ((0, 0), (1, 0), (1, Ws - (Wo + 1)), (0, 0))).astype(MM_DTYPE)

    # ---- weight packing into lane-packed (9*Cp, Coutp) slabs (pure glue) ----
    def _hwio_pad(w):
        w = jnp.transpose(w, (2, 3, 1, 0))               # OIHW -> HWIO
        return jnp.pad(w, ((0, 0), (0, 0), (0, Cp - Cin), (0, Coutp - Cout)))

    wr = _hwio_pad(w_res)
    wo = _hwio_pad(w_out)
    # conv_res slab rows must match the pres lane layout built in the kernel:
    #   [0:4Cp)  taps (1,1),(1,2),(2,1),(2,2)   (full-channel window at offset (1,1))
    #   [4Cp:6Cp) taps (0,1),(0,2)
    #   [6Cp:8Cp) taps (1,0),(2,0)
    #   [8Cp:9Cp) tap  (0,0)
    w_res_slab = jnp.concatenate(
        [wr[1, 1], wr[1, 2], wr[2, 1], wr[2, 2],
         wr[0, 1], wr[0, 2],
         wr[1, 0], wr[2, 0],
         wr[0, 0]], axis=0).astype(MM_DTYPE)             # (9*Cp, Coutp)
    w_out_slab = jnp.concatenate(
        [wo[kh, kw] for kh in range(3) for kw in range(3)],
        axis=0).astype(MM_DTYPE)                         # (9*Cp, Coutp)
    bias = jnp.pad((b_res + b_out).astype(jnp.float32),
                   (0, Coutp - Cout)).reshape(1, Coutp)

    # ---- explicit scoped-VMEM budget (review): block sizes + headroom, capped for v7x ----
    bpe = jnp.dtype(MM_DTYPE).itemsize
    est = (2 * (Ho + 1) * Ws * 4 * Cp * bpe              # double-buffered s2d block
           + 2 * 2 * 9 * Cp * Coutp * bpe                # weight slabs
           + 2 * Coutp * 4                               # bias
           + 2 * HW * Coutp * 4                          # double-buffered output block
           + (Ho + 2) * Wp2 * Cp * bpe                   # rpad scratch
           + 2 * HW * 9 * Cp * bpe                       # patch slabs
           + HW * Coutp * 4                              # accumulator
           + 8 * HW * Cp * bpe)                          # activation temps (slack)
    vmem_limit = int(min(max(2 * est, 32 << 20), 64 << 20))

    out_flat = pl.pallas_call(
        resblock_kernel,
        out_shape=jax.ShapeDtypeStruct((N, HW, Coutp), x_nchw.dtype),
        grid_spec=pltpu.PrefetchScalarGridSpec(
            num_scalar_prefetch=0,
            grid=(N,),
            in_specs=[
                pl.BlockSpec((1, Ho + 1, Ws, 4 * Cp), lambda n: (n, 0, 0, 0)),
                pl.BlockSpec((9 * Cp, Coutp), lambda n: (0, 0)),
                pl.BlockSpec((9 * Cp, Coutp), lambda n: (0, 0)),
                pl.BlockSpec((1, Coutp), lambda n: (0, 0)),
            ],
            out_specs=pl.BlockSpec((1, HW, Coutp), lambda n: (n, 0, 0)),
            scratch_shapes=[
                pltpu.VMEM((Ho + 2, Wp2, Cp), MM_DTYPE),      # rpad
                pltpu.VMEM((HW, 9 * Cp), MM_DTYPE),           # conv_res patch slab
                pltpu.VMEM((HW, 9 * Cp), MM_DTYPE),           # conv_out patch slab
                pltpu.VMEM((HW, Coutp), jnp.float32),         # accumulator
            ],
        ),
        compiler_params=pltpu.CompilerParams(
            dimension_semantics=("parallel",),
            vmem_limit_bytes=vmem_limit,
        ),
    )(s2d_pad, w_res_slab, w_out_slab, bias)

    out_nhwc = out_flat.reshape(N, Ho, Wo, Coutp)[..., :Cout]
    return jnp.transpose(out_nhwc, (0, 3, 1, 2))         # back to NCHW


def resblock_ref(x, w_res, b_res, w_out, b_out):
    """Pure-JAX f32 reference (lax convs / reduce_window), NCHW."""
    dn = ("NCHW", "OIHW", "NCHW")
    x_res = jax.lax.conv_general_dilated(
        x, w_res, (2, 2), [(1, 1), (1, 1)], dimension_numbers=dn)
    x_res = x_res + b_res.reshape(1, -1, 1, 1)
    a = _leaky(x)
    p = jax.lax.reduce_window(a, -jnp.inf, jax.lax.max,
                              (1, 1, 2, 2), (1, 1, 2, 2), "VALID")
    r = _leaky(p)
    out = jax.lax.conv_general_dilated(
        r, w_out, (1, 1), [(1, 1), (1, 1)], dimension_numbers=dn)
    out = out + b_out.reshape(1, -1, 1, 1)
    return out + x_res


if __name__ == "__main__":
    N, Cin, Cout, H, W = 2, 4, 8, 16, 16
    key = jax.random.PRNGKey(0)
    kx, k1, k2, k3, k4 = jax.random.split(key, 5)

    x = jax.random.normal(kx, (N, Cin, H, W), jnp.float32)
    # deterministic synthetic parameters (torch Conv2d shapes: OIHW + bias)
    w_res = jax.random.normal(k1, (Cout, Cin, 3, 3), jnp.float32) * 0.1
    b_res = jax.random.normal(k2, (Cout,), jnp.float32) * 0.1
    w_out = jax.random.normal(k3, (Cout, Cin, 3, 3), jnp.float32) * 0.1
    b_out = jax.random.normal(k4, (Cout,), jnp.float32) * 0.1

    out = resblock_forward(x, w_res, b_res, w_out, b_out)
    jax.block_until_ready(out)

    ref = resblock_ref(x, w_res, b_res, w_out, b_out)
    assert out.shape == (N, Cout, H // 2, W // 2), out.shape
    # bf16 MXU operands (f32 accumulation) -> loosened tolerance vs the f32 reference,
    # as sanctioned by the performance review.
    if not jnp.allclose(out, ref, atol=5e-2, rtol=5e-2):
        err = float(jnp.max(jnp.abs(out - ref)))
        raise AssertionError(f"Pallas ResBlock kernel mismatch vs JAX reference (max abs err {err})")

    print("KERNEL_OK")
</pallas_src>

<mosaic_0001>
module attributes {stable_mosaic.version = 11 : i64} {
  func.func @resblock_kernel(%arg0: i32, %arg1: memref<1x9x16x32xbf16, #tpu.memory_space<vmem>>, %arg2: memref<72x128xbf16, #tpu.memory_space<vmem>>, %arg3: memref<72x128xbf16, #tpu.memory_space<vmem>>, %arg4: memref<1x128xf32, #tpu.memory_space<vmem>>, %arg5: memref<1x64x128xf32, #tpu.memory_space<vmem>>, %arg6: memref<10x16x8xbf16, #tpu.memory_space<vmem>>, %arg7: memref<64x72xbf16, #tpu.memory_space<vmem>>, %arg8: memref<64x72xbf16, #tpu.memory_space<vmem>>, %arg9: memref<64x128xf32, #tpu.memory_space<vmem>>) attributes {dimension_semantics = [#tpu.dimension_semantics<parallel>], iteration_bounds = array<i64: 2>, scalar_prefetch = 0 : i64, scratch_operands = 4 : i64, tpu.core_type = #tpu.core_type<tc>, window_params = [{transform_indices = @transform_0, window_bounds = array<i64: 1, 9, 16, 32>}, {pipeline_mode = #tpu.pipeline_mode<synchronous>, transform_indices = @transform_1, window_bounds = array<i64: 72, 128>}, {pipeline_mode = #tpu.pipeline_mode<synchronous>, transform_indices = @transform_2, window_bounds = array<i64: 72, 128>}, {pipeline_mode = #tpu.pipeline_mode<synchronous>, transform_indices = @transform_3, window_bounds = array<i64: 1, 128>}, {transform_indices = @transform_4, window_bounds = array<i64: 1, 64, 128>}]} {
    %c0 = arith.constant 0 : index
    %c0_0 = arith.constant 0 : index
    %c0_1 = arith.constant 0 : index
    %c0_2 = arith.constant 0 : index
    %0 = vector.load %arg1[%c0, %c0_0, %c0_1, %c0_2] : memref<1x9x16x32xbf16, #tpu.memory_space<vmem>>, vector<1x9x16x32xbf16>
    %1 = vector.shape_cast %0 : vector<1x9x16x32xbf16> to vector<9x16x32xbf16>
    %2 = vector.extract_strided_slice %1 {offsets = [1, 1, 0], sizes = [8, 8, 32], strides = [1, 1, 1]} : vector<9x16x32xbf16> to vector<8x8x32xbf16>
    %3 = vector.shape_cast %2 : vector<8x8x32xbf16> to vector<64x32xbf16>
    %c0_3 = arith.constant 0 : index
    %c0_4 = arith.constant 0 : index
    %4 = vector.load %arg7[%c0_3, %c0_4] : memref<64x72xbf16, #tpu.memory_space<vmem>>, vector<64x32xbf16>
    tpu.vector_store %arg7[%c0_3, %c0_4], %3 {strides = array<i32>} : memref<64x72xbf16, #tpu.memory_space<vmem>>, vector<64x32xbf16>,
    %5 = vector.extract_strided_slice %1 {offsets = [0, 1, 16], sizes = [8, 8, 16], strides = [1, 1, 1]} : vector<9x16x32xbf16> to vector<8x8x16xbf16>
    %6 = vector.shape_cast %5 : vector<8x8x16xbf16> to vector<64x16xbf16>
    %c0_5 = arith.constant 0 : index
    %c32 = arith.constant 32 : index
    %7 = vector.load %arg7[%c0_5, %c32] : memref<64x72xbf16, #tpu.memory_space<vmem>>, vector<64x16xbf16>
    tpu.vector_store %arg7[%c0_5, %c32], %6 {strides = array<i32>} : memref<64x72xbf16, #tpu.memory_space<vmem>>, vector<64x16xbf16>,
    %8 = vector.extract_strided_slice %1 {offsets = [1, 0, 8], sizes = [8, 8, 8], strides = [1, 1, 1]} : vector<9x16x32xbf16> to vector<8x8x8xbf16>
    %9 = vector.shape_cast %8 : vector<8x8x8xbf16> to vector<64x8xbf16>
    %c0_6 = arith.constant 0 : index
    %c48 = arith.constant 48 : index
    %10 = vector.load %arg7[%c0_6, %c48] : memref<64x72xbf16, #tpu.memory_space<vmem>>, vector<64x8xbf16>
    tpu.vector_store %arg7[%c0_6, %c48], %9 {strides = array<i32>} : memref<64x72xbf16, #tpu.memory_space<vmem>>, vector<64x8xbf16>,
    %11 = vector.extract_strided_slice %1 {offsets = [1, 0, 24], sizes = [8, 8, 8], strides = [1, 1, 1]} : vector<9x16x32xbf16> to vector<8x8x8xbf16>
    %12 = vector.shape_cast %11 : vector<8x8x8xbf16> to vector<64x8xbf16>
    %c0_7 = arith.constant 0 : index
    %c56 = arith.constant 56 : index
    %13 = vector.load %arg7[%c0_7, %c56] : memref<64x72xbf16, #tpu.memory_space<vmem>>, vector<64x8xbf16>
    tpu.vector_store %arg7[%c0_7, %c56], %12 {strides = array<i32>} : memref<64x72xbf16, #tpu.memory_space<vmem>>, vector<64x8xbf16>,
    %14 = vector.extract_strided_slice %1 {offsets = [0, 0, 24], sizes = [8, 8, 8], strides = [1, 1, 1]} : vector<9x16x32xbf16> to vector<8x8x8xbf16>
    %15 = vector.shape_cast %14 : vector<8x8x8xbf16> to vector<64x8xbf16>
    %c0_8 = arith.constant 0 : index
    %c64 = arith.constant 64 : index
    %16 = vector.load %arg7[%c0_8, %c64] : memref<64x72xbf16, #tpu.memory_space<vmem>>, vector<64x8xbf16>
    tpu.vector_store %arg7[%c0_8, %c64], %15 {strides = array<i32>} : memref<64x72xbf16, #tpu.memory_space<vmem>>, vector<64x8xbf16>,
    %c0_9 = arith.constant 0 : index
    %c0_10 = arith.constant 0 : index
    %17 = vector.load %arg7[%c0_9, %c0_10] : memref<64x72xbf16, #tpu.memory_space<vmem>>, vector<64x72xbf16>
    %c0_11 = arith.constant 0 : index
    %c0_12 = arith.constant 0 : index
    %18 = vector.load %arg2[%c0_11, %c0_12] : memref<72x128xbf16, #tpu.memory_space<vmem>>, vector<72x128xbf16>
    %cst = arith.constant dense<0.000000e+00> : vector<64x128xf32>
    %19 = tpu.matmul %17, %18, %cst {dimension_numbers = #tpu.dot_dimension_numbers<[1], [0], [0], [1], [0, 0, 1, 1], [], []>} : vector<64x72xbf16>, vector<72x128xbf16>, vector<64x128xf32> -> vector<64x128xf32>
    %c0_13 = arith.constant 0 : index
    %c0_14 = arith.constant 0 : index
    %20 = vector.load %arg9[%c0_13, %c0_14] : memref<64x128xf32, #tpu.memory_space<vmem>>, vector<64x128xf32>
    tpu.vector_store %arg9[%c0_13, %c0_14], %19 {strides = array<i32>} : memref<64x128xf32, #tpu.memory_space<vmem>>, vector<64x128xf32>,
    %cst_15 = arith.constant 0.000000e+00 : bf16
    %21 = vector.broadcast %cst_15 : bf16 to vector<8x8x32xbf16>
    %22 = arith.cmpf oge, %2, %21 : vector<8x8x32xbf16>
    %cst_16 = arith.constant 1.000980e-02 : bf16
    %23 = vector.broadcast %cst_16 : bf16 to vector<8x8x32xbf16>
    %24 = arith.mulf %23, %2 : vector<8x8x32xbf16>
    %25 = arith.select %22, %2, %24 : vector<8x8x32xi1>, vector<8x8x32xbf16>
    %26 = vector.extract_strided_slice %25 {offsets = [0, 0, 0], sizes = [8, 8, 8], strides = [1, 1, 1]} : vector<8x8x32xbf16> to vector<8x8x8xbf16>
    %27 = vector.extract_strided_slice %25 {offsets = [0, 0, 8], sizes = [8, 8, 8], strides = [1, 1, 1]} : vector<8x8x32xbf16> to vector<8x8x8xbf16>
    %28 = arith.maximumf %26, %27 : vector<8x8x8xbf16>
    %29 = vector.extract_strided_slice %25 {offsets = [0, 0, 16], sizes = [8, 8, 8], strides = [1, 1, 1]} : vector<8x8x32xbf16> to vector<8x8x8xbf16>
    %30 = vector.extract_strided_slice %25 {offsets = [0, 0, 24], sizes = [8, 8, 8], strides = [1, 1, 1]} : vector<8x8x32xbf16> to vector<8x8x8xbf16>
    %31 = arith.maximumf %29, %30 : vector<8x8x8xbf16>
    %32 = arith.maximumf %28, %31 : vector<8x8x8xbf16>
    %cst_17 = arith.constant 0.000000e+00 : bf16
    %33 = vector.broadcast %cst_17 : bf16 to vector<8x8x8xbf16>
    %34 = arith.cmpf oge, %32, %33 : vector<8x8x8xbf16>
    %cst_18 = arith.constant 1.000980e-02 : bf16
    %35 = vector.broadcast %cst_18 : bf16 to vector<8x8x8xbf16>
    %36 = arith.mulf %35, %32 : vector<8x8x8xbf16>
    %37 = arith.select %34, %32, %36 : vector<8x8x8xi1>, vector<8x8x8xbf16>
    %cst_19 = arith.constant 0.000000e+00 : bf16
    %38 = vector.broadcast %cst_19 : bf16 to vector<1x16x8xbf16>
    %c0_20 = arith.constant 0 : index
    %c0_21 = arith.constant 0 : index
    %c0_22 = arith.constant 0 : index
    %39 = vector.load %arg6[%c0_20, %c0_21, %c0_22] : memref<10x16x8xbf16, #tpu.memory_space<vmem>>, vector<1x16x8xbf16>
    tpu.vector_store %arg6[%c0_20, %c0_21, %c0_22], %38 {strides = array<i32>} : memref<10x16x8xbf16, #tpu.memory_space<vmem>>, vector<1x16x8xbf16>,
    %cst_23 = arith.constant 0.000000e+00 : bf16
    %40 = vector.broadcast %cst_23 : bf16 to vector<1x16x8xbf16>
    %c9 = arith.constant 9 : index
    %c0_24 = arith.constant 0 : index
    %c0_25 = arith.constant 0 : index
    %41 = vector.load %arg6[%c9, %c0_24, %c0_25] : memref<10x16x8xbf16, #tpu.memory_space<vmem>>, vector<1x16x8xbf16>
    tpu.vector_store %arg6[%c9, %c0_24, %c0_25], %40 {strides = array<i32>} : memref<10x16x8xbf16, #tpu.memory_space<vmem>>, vector<1x16x8xbf16>,
    %cst_26 = arith.constant 0.000000e+00 : bf16
    %42 = vector.broadcast %cst_26 : bf16 to vector<10x1x8xbf16>
    %c0_27 = arith.constant 0 : index
    %c0_28 = arith.constant 0 : index
    %c0_29 = arith.constant 0 : index
    %43 = vector.load %arg6[%c0_27, %c0_28, %c0_29] : memref<10x16x8xbf16, #tpu.memory_space<vmem>>, vector<10x1x8xbf16>
    tpu.vector_store %arg6[%c0_27, %c0_28, %c0_29], %42 {strides = array<i32>} : memref<10x16x8xbf16, #tpu.memory_space<vmem>>, vector<10x1x8xbf16>,
    %cst_30 = arith.constant 0.000000e+00 : bf16
    %44 = vector.broadcast %cst_30 : bf16 to vector<10x7x8xbf16>
    %c0_31 = arith.constant 0 : index
    %c9_32 = arith.constant 9 : index
    %c0_33 = arith.constant 0 : index
    %45 = vector.load %arg6[%c0_31, %c9_32, %c0_33] : memref<10x16x8xbf16, #tpu.memory_space<vmem>>, vector<10x7x8xbf16>
    tpu.vector_store %arg6[%c0_31, %c9_32, %c0_33], %44 {strides = array<i32>} : memref<10x16x8xbf16, #tpu.memory_space<vmem>>, vector<10x7x8xbf16>,
    %c1 = arith.constant 1 : index
    %c1_34 = arith.constant 1 : index
    %c0_35 = arith.constant 0 : index
    %46 = vector.load %arg6[%c1, %c1_34, %c0_35] : memref<10x16x8xbf16, #tpu.memory_space<vmem>>, vector<8x8x8xbf16>
    tpu.vector_store %arg6[%c1, %c1_34, %c0_35], %37 {strides = array<i32>} : memref<10x16x8xbf16, #tpu.memory_space<vmem>>, vector<8x8x8xbf16>,
    %c0_36 = arith.constant 0 : index
    %c0_37 = arith.constant 0 : index
    %c0_38 = arith.constant 0 : index
    %47 = vector.load %arg6[%c0_36, %c0_37, %c0_38] : memref<10x16x8xbf16, #tpu.memory_space<vmem>>, vector<8x8x8xbf16>
    %48 = vector.shape_cast %47 : vector<8x8x8xbf16> to vector<64x8xbf16>
    %c0_39 = arith.constant 0 : index
    %c0_40 = arith.constant 0 : index
    %49 = vector.load %arg8[%c0_39, %c0_40] : memref<64x72xbf16, #tpu.memory_space<vmem>>, vector<64x8xbf16>
    tpu.vector_store %arg8[%c0_39, %c0_40], %48 {strides = array<i32>} : memref<64x72xbf16, #tpu.memory_space<vmem>>, vector<64x8xbf16>,
    %c0_41 = arith.constant 0 : index
    %c1_42 = arith.constant 1 : index
    %c0_43 = arith.constant 0 : index
    %50 = vector.load %arg6[%c0_41, %c1_42, %c0_43] : memref<10x16x8xbf16, #tpu.memory_space<vmem>>, vector<8x8x8xbf16>
    %51 = vector.shape_cast %50 : vector<8x8x8xbf16> to vector<64x8xbf16>
    %c0_44 = arith.constant 0 : index
    %c8 = arith.constant 8 : index
    %52 = vector.load %arg8[%c0_44, %c8] : memref<64x72xbf16, #tpu.memory_space<vmem>>, vector<64x8xbf16>
    tpu.vector_store %arg8[%c0_44, %c8], %51 {strides = array<i32>} : memref<64x72xbf16, #tpu.memory_space<vmem>>, vector<64x8xbf16>,
    %c0_45 = arith.constant 0 : index
    %c2 = arith.constant 2 : index
    %c0_46 = arith.constant 0 : index
    %53 = vector.load %arg6[%c0_45, %c2, %c0_46] : memref<10x16x8xbf16, #tpu.memory_space<vmem>>, vector<8x8x8xbf16>
    %54 = vector.shape_cast %53 : vector<8x8x8xbf16> to vector<64x8xbf16>
    %c0_47 = arith.constant 0 : index
    %c16 = arith.constant 16 : index
    %55 = vector.load %arg8[%c0_47, %c16] : memref<64x72xbf16, #tpu.memory_space<vmem>>, vector<64x8xbf16>
    tpu.vector_store %arg8[%c0_47, %c16], %54 {strides = array<i32>} : memref<64x72xbf16, #tpu.memory_space<vmem>>, vector<64x8xbf16>,
    %c1_48 = arith.constant 1 : index
    %c0_49 = arith.constant 0 : index
    %c0_50 = arith.constant 0 : index
    %56 = vector.load %arg6[%c1_48, %c0_49, %c0_50] : memref<10x16x8xbf16, #tpu.memory_space<vmem>>, vector<8x8x8xbf16>
    %57 = vector.shape_cast %56 : vector<8x8x8xbf16> to vector<64x8xbf16>
    %c0_51 = arith.constant 0 : index
    %c24 = arith.constant 24 : index
    %58 = vector.load %arg8[%c0_51, %c24] : memref<64x72xbf16, #tpu.memory_space<vmem>>, vector<64x8xbf16>
    tpu.vector_store %arg8[%c0_51, %c24], %57 {strides = array<i32>} : memref<64x72xbf16, #tpu.memory_space<vmem>>, vector<64x8xbf16>,
    %c1_52 = arith.constant 1 : index
    %c1_53 = arith.constant 1 : index
    %c0_54 = arith.constant 0 : index
    %59 = vector.load %arg6[%c1_52, %c1_53, %c0_54] : memref<10x16x8xbf16, #tpu.memory_space<vmem>>, vector<8x8x8xbf16>
    %60 = vector.shape_cast %59 : vector<8x8x8xbf16> to vector<64x8xbf16>
    %c0_55 = arith.constant 0 : index
    %c32_56 = arith.constant 32 : index
    %61 = vector.load %arg8[%c0_55, %c32_56] : memref<64x72xbf16, #tpu.memory_space<vmem>>, vector<64x8xbf16>
    tpu.vector_store %arg8[%c0_55, %c32_56], %60 {strides = array<i32>} : memref<64x72xbf16, #tpu.memory_space<vmem>>, vector<64x8xbf16>,
    %c1_57 = arith.constant 1 : index
    %c2_58 = arith.constant 2 : index
    %c0_59 = arith.constant 0 : index
    %62 = vector.load %arg6[%c1_57, %c2_58, %c0_59] : memref<10x16x8xbf16, #tpu.memory_space<vmem>>, vector<8x8x8xbf16>
    %63 = vector.shape_cast %62 : vector<8x8x8xbf16> to vector<64x8xbf16>
    %c0_60 = arith.constant 0 : index
    %c40 = arith.constant 40 : index
    %64 = vector.load %arg8[%c0_60, %c40] : memref<64x72xbf16, #tpu.memory_space<vmem>>, vector<64x8xbf16>
    tpu.vector_store %arg8[%c0_60, %c40], %63 {strides = array<i32>} : memref<64x72xbf16, #tpu.memory_space<vmem>>, vector<64x8xbf16>,
    %c2_61 = arith.constant 2 : index
    %c0_62 = arith.constant 0 : index
    %c0_63 = arith.constant 0 : index
    %65 = vector.load %arg6[%c2_61, %c0_62, %c0_63] : memref<10x16x8xbf16, #tpu.memory_space<vmem>>, vector<8x8x8xbf16>
    %66 = vector.shape_cast %65 : vector<8x8x8xbf16> to vector<64x8xbf16>
    %c0_64 = arith.constant 0 : index
    %c48_65 = arith.constant 48 : index
    %67 = vector.load %arg8[%c0_64, %c48_65] : memref<64x72xbf16, #tpu.memory_space<vmem>>, vector<64x8xbf16>
    tpu.vector_store %arg8[%c0_64, %c48_65], %66 {strides = array<i32>} : memref<64x72xbf16, #tpu.memory_space<vmem>>, vector<64x8xbf16>,
    %c2_66 = arith.constant 2 : index
    %c1_67 = arith.constant 1 : index
    %c0_68 = arith.constant 0 : index
    %68 = vector.load %arg6[%c2_66, %c1_67, %c0_68] : memref<10x16x8xbf16, #tpu.memory_space<vmem>>, vector<8x8x8xbf16>
    %69 = vector.shape_cast %68 : vector<8x8x8xbf16> to vector<64x8xbf16>
    %c0_69 = arith.constant 0 : index
    %c56_70 = arith.constant 56 : index
    %70 = vector.load %arg8[%c0_69, %c56_70] : memref<64x72xbf16, #tpu.memory_space<vmem>>, vector<64x8xbf16>
    tpu.vector_store %arg8[%c0_69, %c56_70], %69 {strides = array<i32>} : memref<64x72xbf16, #tpu.memory_space<vmem>>, vector<64x8xbf16>,
    %c2_71 = arith.constant 2 : index
    %c2_72 = arith.constant 2 : index
    %c0_73 = arith.constant 0 : index
    %71 = vector.load %arg6[%c2_71, %c2_72, %c0_73] : memref<10x16x8xbf16, #tpu.memory_space<vmem>>, vector<8x8x8xbf16>
    %72 = vector.shape_cast %71 : vector<8x8x8xbf16> to vector<64x8xbf16>
    %c0_74 = arith.constant 0 : index
    %c64_75 = arith.constant 64 : index
    %73 = vector.load %arg8[%c0_74, %c64_75] : memref<64x72xbf16, #tpu.memory_space<vmem>>, vector<64x8xbf16>
    tpu.vector_store %arg8[%c0_74, %c64_75], %72 {strides = array<i32>} : memref<64x72xbf16, #tpu.memory_space<vmem>>, vector<64x8xbf16>,
    %c0_76 = arith.constant 0 : index
    %c0_77 = arith.constant 0 : index
    %74 = vector.load %arg9[%c0_76, %c0_77] : memref<64x128xf32, #tpu.memory_space<vmem>>, vector<64x128xf32>
    %c0_78 = arith.constant 0 : index
    %c0_79 = arith.constant 0 : index
    %75 = vector.load %arg8[%c0_78, %c0_79] : memref<64x72xbf16, #tpu.memory_space<vmem>>, vector<64x72xbf16>
    %c0_80 = arith.constant 0 : index
    %c0_81 = arith.constant 0 : index
    %76 = vector.load %arg3[%c0_80, %c0_81] : memref<72x128xbf16, #tpu.memory_space<vmem>>, vector<72x128xbf16>
    %cst_82 = arith.constant dense<0.000000e+00> : vector<64x128xf32>
    %77 = tpu.matmul %75, %76, %cst_82 {dimension_numbers = #tpu.dot_dimension_numbers<[1], [0], [0], [1], [0, 0, 1, 1], [], []>} : vector<64x72xbf16>, vector<72x128xbf16>, vector<64x128xf32> -> vector<64x128xf32>
    %78 = arith.addf %74, %77 : vector<64x128xf32>
    %c0_83 = arith.constant 0 : index
    %c0_84 = arith.constant 0 : index
    %79 = vector.load %arg9[%c0_83, %c0_84] : memref<64x128xf32, #tpu.memory_space<vmem>>, vector<64x128xf32>
    tpu.vector_store %arg9[%c0_83, %c0_84], %78 {strides = array<i32>} : memref<64x128xf32, #tpu.memory_space<vmem>>, vector<64x128xf32>,
    %c0_85 = arith.constant 0 : index
    %c0_86 = arith.constant 0 : index
    %80 = vector.load %arg9[%c0_85, %c0_86] : memref<64x128xf32, #tpu.memory_space<vmem>>, vector<64x128xf32>
    %c0_87 = arith.constant 0 : index
    %c0_88 = arith.constant 0 : index
    %81 = vector.load %arg4[%c0_87, %c0_88] : memref<1x128xf32, #tpu.memory_space<vmem>>, vector<1x128xf32>
    %82 = vector.broadcast %81 : vector<1x128xf32> to vector<64x128xf32>
    %83 = arith.addf %80, %82 : vector<64x128xf32>
    %c0_89 = arith.constant 0 : index
    %c0_90 = arith.constant 0 : index
    %c0_91 = arith.constant 0 : index
    %84 = vector.load %arg5[%c0_89, %c0_90, %c0_91] : memref<1x64x128xf32, #tpu.memory_space<vmem>>, vector<1x64x128xf32>
    %85 = vector.shape_cast %84 : vector<1x64x128xf32> to vector<64x128xf32>
    %86 = vector.shape_cast %83 : vector<64x128xf32> to vector<1x64x128xf32>
    tpu.vector_store %arg5[%c0_89, %c0_90, %c0_91], %86 {strides = array<i32>} : memref<1x64x128xf32, #tpu.memory_space<vmem>>, vector<1x64x128xf32>,
    return
  }
  func.func @transform_0(%arg0: i32) -> (i32, i32, i32, i32) {
    %c0_i32 = arith.constant 0 : i32
    %c0_i32_0 = arith.constant 0 : i32
    %c0_i32_1 = arith.constant 0 : i32
    %c0_i32_2 = arith.constant 0 : i32
    return %arg0, %c0_i32, %c0_i32_0, %c0_i32_1 : i32, i32, i32, i32
  }
  func.func @transform_1(%arg0: i32) -> (i32, i32) {
    %c0_i32 = arith.constant 0 : i32
    %c0_i32_0 = arith.constant 0 : i32
    %c0_i32_1 = arith.constant 0 : i32
    return %c0_i32, %c0_i32_0 : i32, i32
  }
  func.func @transform_2(%arg0: i32) -> (i32, i32) {
    %c0_i32 = arith.constant 0 : i32
    %c0_i32_0 = arith.constant 0 : i32
    %c0_i32_1 = arith.constant 0 : i32
    return %c0_i32, %c0_i32_0 : i32, i32
  }
  func.func @transform_3(%arg0: i32) -> (i32, i32) {
    %c0_i32 = arith.constant 0 : i32
    %c0_i32_0 = arith.constant 0 : i32
    %c0_i32_1 = arith.constant 0 : i32
    return %c0_i32, %c0_i32_0 : i32, i32
  }
  func.func @transform_4(%arg0: i32) -> (i32, i32, i32) {
    %c0_i32 = arith.constant 0 : i32
    %c0_i32_0 = arith.constant 0 : i32
    %c0_i32_1 = arith.constant 0 : i32
    return %arg0, %c0_i32, %c0_i32_0 : i32, i32, i32
  }
}

</mosaic_0001>

<llo_original>
// kernel: tpu_custom_call.1
$region0: #{tpu_custom_call.1}
  #allocation0 [shape = 'u32[]', space=smem, size = 0x4, offset = 0x4, fixed_abs, tag = 'smem constant byte address 0x4 - core index']
  #allocation1 [shape = 'u32[144,128]{1,0:T(1,128)}', space=vmem, size = 0x12000, scoped, tag = 'internal scratch']
  #allocation2 [shape = 'bf16[10,16,8]{2,1,0:T(16,128)(2,1)}', space=vmem, size = 0xa000, scoped, tag = 'scratch operand']
  #allocation3 [shape = 'bf16[64,72]{1,0:T(16,128)(2,1)}', space=vmem, size = 0x4000, scoped, tag = 'scratch operand']
  #allocation4 [shape = 'bf16[64,72]{1,0:T(16,128)(2,1)}', space=vmem, size = 0x4000, scoped, tag = 'scratch operand']
  #allocation5 [shape = 'f32[64,128]{1,0:T(8,128)}', space=vmem, size = 0x8000, scoped, tag = 'scratch operand']
  %s0 = inlined_call_operand.hbm [shape: bf16[2,9,16,32], index: 0, kind: input, shape index: {}]
  %s1 = inlined_call_operand.hbm [shape: bf16[72,128], index: 1, kind: input, shape index: {}]
  %s2 = inlined_call_operand.hbm [shape: bf16[72,128], index: 2, kind: input, shape index: {}]
  %s3 = inlined_call_operand.vmem [shape: f32[1,128], index: 3, kind: input, shape index: {}]
  %s4 = inlined_call_operand.hbm [shape: f32[2,64,128], index: 4, kind: output, shape index: {}]
  %s5 = sld [smem:[#allocation0]]
  $region61: #{tpu_custom_call.1} parent=0
    _
  %s7 = ssub.s32 1, %s5
  %s8 = scalar_select 0, %s7, %s5
  $region1: #{tpu_custom_call.1} parent=0
    #allocation6 [shape = 'u8[73728]{0}', space=vmem, size = 0x12000, scoped, tag = 'input window, operand 0']
    #allocation7 [shape = 's32[2]{0}', space=sflag, size = 0x8, scoped, tag = 'scoped memory for tpu_custom_call.1']
    #allocation8 [shape = 's32[2]{0}', space=sflag, size = 0x8, scoped, tag = 'scoped memory for tpu_custom_call.1']
    #allocation9 [shape = 'u8[18432]{0}', space=vmem, size = 0x4800, scoped, tag = 'input window, operand 1, single buffered']
    #allocation10 [shape = 's32[1]{0}', space=sflag, size = 0x4, scoped, tag = 'scoped memory for tpu_custom_call.1']
    #allocation11 [shape = 'u8[18432]{0}', space=vmem, size = 0x4800, scoped, tag = 'input window, operand 2, single buffered']
    #allocation12 [shape = 'u8[65536]{0}', space=vmem, size = 0x10000, scoped, tag = 'output window, operand 0']
    %9 = vsyncpa [#allocation7], 0
    %s10 = scalar_lea.sflag [#allocation7], 1
    %11 = vsyncpa %s10, 0
    %12 = vsyncpa [#allocation10], 0
    %13 = vsyncpa [#allocation8], 0
    %s14 = scalar_lea.sflag [#allocation8], 1
    %15 = vsyncpa %s14, 0
    loop: start=0, step=1, limit=4
    $region2: #{tpu_custom_call.1} parent=1 // loop_pre_header
      _
    $region3: #{tpu_custom_call.1} parent=1 // loop_header
      %s17 = sphi 0, %s21
      %p18 = scmp.ge.s32.totalorder %s17, 4
      %s27 = sphi 0, %s29
      %s30 = sphi 0, %s27
      %s31 = sphi 0, %s30
      %s47 = sphi 0, %s31
      %s51 = sphi 0, %s51
      %s53 = sphi 0, %s51
      %s54 = sphi 0, %s53
      %s68 = sphi 0, %s54
      %s72 = sphi 0, %s72
      %s74 = sphi 0, %s72
      %s75 = sphi 0, %s74
      %s89 = sphi 0, %s75
      %s93 = sphi 0, %s93
      %s95 = sphi 0, %s93
      %s96 = sphi 0, %s95
      %s110 = sphi 0, %s96
      %s116 = sphi 0, %s118
      %s119 = sphi 0, %s116
      %s120 = sphi 0, %s119
      %s136 = sphi 0, %s120
    $region4: #{tpu_custom_call.1} parent=1 // loop_header_branch
      %20 = sbr.rel (%p18) target = $region8
    $region5: #{tpu_custom_call.1} parent=1 // loop_body
      %s22 = ssub.s32 %s17, 1
      %s23 = ssub.s32 %s17, 2
      %s24 = sadd.s32 %s17, 1
      %s25 = ssub.s32 %s17, %s24
      %p26 = scmp.eq.s32.totalorder %s25, 0
      %s28 = sadd.s32 %s27, 1
      %s29 = scalar_select %p26, %s27, %s28
      %p32 = pneg %p26
      %p33 = scmp.eq.s32.totalorder %s17, 1
      %p34 = por %p32, %p33
      %p35 = scmp.ne.s32.totalorder %s27, %s30
      %p36 = scmp.eq.s32.totalorder %s17, 0
      %p37 = por %p35, %p36
      %p38 = scmp.ne.s32.totalorder %s27, %s30
      %p39 = scmp.eq.s32.totalorder %s22, 1
      %p40 = por %p38, %p39
      %p41 = scmp.ne.s32.totalorder %s30, %s31
      %p42 = scmp.eq.s32.totalorder %s22, 0
      %p43 = por %p41, %p42
      %p44 = scmp.ne.s32.totalorder %s30, %s31
      %p45 = scmp.eq.s32.totalorder %s23, 1
      %p46 = por %p44, %p45
      %p48 = scmp.ne.s32.totalorder %s31, %s47
      %p49 = scmp.eq.s32.totalorder %s23, 0
      %p50 = por %p48, %p49
      %s52 = sadd.s32 %s51, 1
      %p55 = scmp.eq.s32.totalorder %s17, 1
      %p56 = scmp.ne.s32.totalorder %s51, %s53
      %p57 = scmp.eq.s32.totalorder %s17, 0
      %p58 = por %p56, %p57
      %p59 = scmp.ne.s32.totalorder %s51, %s53
      %p60 = scmp.eq.s32.totalorder %s22, 1
      %p61 = por %p59, %p60
      %p62 = scmp.ne.s32.totalorder %s53, %s54
      %p63 = scmp.eq.s32.totalorder %s22, 0
      %p64 = por %p62, %p63
      %p65 = scmp.ne.s32.totalorder %s53, %s54
      %p66 = scmp.eq.s32.totalorder %s23, 1
      %p67 = por %p65, %p66
      %p69 = scmp.ne.s32.totalorder %s54, %s68
      %p70 = scmp.eq.s32.totalorder %s23, 0
      %p71 = por %p69, %p70
      %s73 = sadd.s32 %s72, 1
      %p76 = scmp.eq.s32.totalorder %s17, 1
      %p77 = scmp.ne.s32.totalorder %s72, %s74
      %p78 = scmp.eq.s32.totalorder %s17, 0
      %p79 = por %p77, %p78
      %p80 = scmp.ne.s32.totalorder %s72, %s74
      %p81 = scmp.eq.s32.totalorder %s22, 1
      %p82 = por %p80, %p81
      %p83 = scmp.ne.s32.totalorder %s74, %s75
      %p84 = scmp.eq.s32.totalorder %s22, 0
      %p85 = por %p83, %p84
      %p86 = scmp.ne.s32.totalorder %s74, %s75
      %p87 = scmp.eq.s32.totalorder %s23, 1
      %p88 = por %p86, %p87
      %p90 = scmp.ne.s32.totalorder %s75, %s89
      %p91 = scmp.eq.s32.totalorder %s23, 0
      %p92 = por %p90, %p91
      %s94 = sadd.s32 %s93, 1
      %p97 = scmp.eq.s32.totalorder %s17, 1
      %p98 = scmp.ne.s32.totalorder %s93, %s95
      %p99 = scmp.eq.s32.totalorder %s17, 0
      %p100 = por %p98, %p99
      %p101 = scmp.ne.s32.totalorder %s93, %s95
      %p102 = scmp.eq.s32.totalorder %s22, 1
      %p103 = por %p101, %p102
      %p104 = scmp.ne.s32.totalorder %s95, %s96
      %p105 = scmp.eq.s32.totalorder %s22, 0
      %p106 = por %p104, %p105
      %p107 = scmp.ne.s32.totalorder %s95, %s96
      %p108 = scmp.eq.s32.totalorder %s23, 1
      %p109 = por %p107, %p108
      %p111 = scmp.ne.s32.totalorder %s96, %s110
      %p112 = scmp.eq.s32.totalorder %s23, 0
      %p113 = por %p111, %p112
      %s114 = ssub.s32 %s17, %s24
      %p115 = scmp.eq.s32.totalorder %s114, 0
      %s117 = sadd.s32 %s116, 1
      %s118 = scalar_select %p115, %s116, %s117
      %p121 = pneg %p115
      %p122 = scmp.eq.s32.totalorder %s17, 1
      %p123 = por %p121, %p122
      %p124 = scmp.ne.s32.totalorder %s116, %s119
      %p125 = scmp.eq.s32.totalorder %s17, 0
      %p126 = por %p124, %p125
      %p127 = scmp.ne.s32.totalorder %s116, %s119
      %p128 = scmp.eq.s32.totalorder %s22, 1
      %p129 = por %p127, %p128
      %p130 = scmp.ne.s32.totalorder %s119, %s120
      %p131 = scmp.eq.s32.totalorder %s22, 0
      %p132 = por %p130, %p131
      %p133 = scmp.ne.s32.totalorder %s119, %s120
      %p134 = scmp.eq.s32.totalorder %s23, 1
      %p135 = por %p133, %p134
      %p137 = scmp.ne.s32.totalorder %s120, %s136
      %p138 = scmp.eq.s32.totalorder %s23, 0
      %p139 = por %p137, %p138
      %p140 = scmp.le.s32.totalorder 1, %s17
      %p141 = scmp.lt.s32.totalorder %s17, 3
      %p142 = pnand %p140, %p141
      %p143 = pneg %p142
      // Predicated region
      $region9: #{tpu_custom_call.1} parent=5 // pred_check
        _
      $region10: #{tpu_custom_call.1} parent=5 // pred_check_branch
        %145 = sbr.rel (%p142) target = $region12
      $region11: #{tpu_custom_call.1} parent=5 // pred_region
        %s146 = ssub.s32 %s17, 1
        // Predicated region
        $region13: #{tpu_custom_call.1} parent=11 // pred_check
          %p147 = pneg %p64
        $region14: #{tpu_custom_call.1} parent=11 // pred_check_branch
          %149 = sbr.rel (%p147) target = $region16
        $region15: #{tpu_custom_call.1} parent=11 // pred_region
          %s151 = ssub.s32 576, 576
          %152 = vsyncadd [#allocation10], %s151
          %s153 = sshll.u32 [#allocation9], 4
          %s154 = int_to_ptr.vmem [resolvable:$true] %s153
          %159 = dma.hbm_to_vmem [thread:$0]  %s1, 576, %s154, [#allocation10], 64, 64, 4
        $region16: #{tpu_custom_call.1} parent=11 // pred_fallthru
          _
        // Predicated region
        $region17: #{tpu_custom_call.1} parent=11 // pred_check
          %p160 = pneg %p85
        $region18: #{tpu_custom_call.1} parent=11 // pred_check_branch
          %162 = sbr.rel (%p160) target = $region20
        $region19: #{tpu_custom_call.1} parent=11 // pred_region
          %s164 = ssub.s32 576, 576
          %165 = vsyncadd [#allocation10], %s164
          %s166 = sshll.u32 [#allocation11], 4
          %s167 = int_to_ptr.vmem [resolvable:$true] %s166
          %172 = dma.hbm_to_vmem [thread:$0]  %s2, 576, %s167, [#allocation10], 64, 64, 4
        $region20: #{tpu_custom_call.1} parent=11 // pred_fallthru
          _
        // Predicated region
        $region21: #{tpu_custom_call.1} parent=11 // pred_check
          %p173 = pneg %p106
        $region22: #{tpu_custom_call.1} parent=11 // pred_check_branch
          %175 = sbr.rel (%p173) target = $region24
        $region23: #{tpu_custom_call.1} parent=11 // pred_region
          _
        $region24: #{tpu_custom_call.1} parent=11 // pred_fallthru
          _
      $region12: #{tpu_custom_call.1} parent=5 // pred_fallthru
        _
      %p176 = scmp.lt.s32.totalorder %s17, 2
      // Predicated region
      $region25: #{tpu_custom_call.1} parent=5 // pred_check
        %p177 = pneg %p176
      $region26: #{tpu_custom_call.1} parent=5 // pred_check_branch
        %179 = sbr.rel (%p177) target = $region28
      $region27: #{tpu_custom_call.1} parent=5 // pred_region
        // Predicated region
        $region29: #{tpu_custom_call.1} parent=27 // pred_check
          %p180 = pneg %p37
        $region30: #{tpu_custom_call.1} parent=27 // pred_check_branch
          %182 = sbr.rel (%p180) target = $region32
        $region31: #{tpu_custom_call.1} parent=27 // pred_region
          %s183 = sand.u32 %s27, 1
          %s184 = scalar_lea.sflag [#allocation7], %s183
          %s185 = sand.u32 %s27, 1
          %s186 = smul.addr %s185, 72
          %s187 = scalar_lea.vmem [#allocation6], %s186
          %s189 = ssub.s32 1152, 1152
          %190 = vsyncadd %s184, %s189
          %s191 = smul.addr %s17, 18
          %s192 = smul.addr %s191, 64
          %s193 = scalar_lea.hbm %s0, %s192
          %s194 = sshll.u32 %s187, 4
          %s195 = int_to_ptr.vmem [resolvable:$true] %s194
          %200 = dma.hbm_to_vmem [thread:$0]  %s193, 1152, %s195, %s184, 64, 64, 4
        $region32: #{tpu_custom_call.1} parent=27 // pred_fallthru
          _
      $region28: #{tpu_custom_call.1} parent=5 // pred_fallthru
        _
      %p201 = scmp.le.s32.totalorder 1, %s17
      %p202 = scmp.lt.s32.totalorder %s17, 3
      %p203 = pnand %p201, %p202
      %p204 = pneg %p203
      // Predicated region
      $region33: #{tpu_custom_call.1} parent=5 // pred_check
        _
      $region34: #{tpu_custom_call.1} parent=5 // pred_check_branch
        %206 = sbr.rel (%p203) target = $region36
      $region35: #{tpu_custom_call.1} parent=5 // pred_region
        %s207 = ssub.s32 %s17, 1
        %s208 = sand.u32 %s30, 1
        %s209 = scalar_lea.sflag [#allocation7], %s208
        %s210 = sand.u32 %s30, 1
        %s211 = smul.addr %s210, 72
        %s212 = scalar_lea.vmem [#allocation6], %s211
        // Predicated region
        $region37: #{tpu_custom_call.1} parent=35 // pred_check
          %p213 = pneg %p43
        $region38: #{tpu_custom_call.1} parent=35 // pred_check_branch
          %215 = sbr.rel (%p213) target = $region40
        $region39: #{tpu_custom_call.1} parent=35 // pred_region
          %216 = dma.done %s209, 1152
        $region40: #{tpu_custom_call.1} parent=35 // pred_fallthru
          _
        // Predicated region
        $region41: #{tpu_custom_call.1} parent=35 // pred_check
          %p217 = pneg %p64
        $region42: #{tpu_custom_call.1} parent=35 // pred_check_branch
          %219 = sbr.rel (%p217) target = $region44
        $region43: #{tpu_custom_call.1} parent=35 // pred_region
          %220 = dma.done [#allocation10], 576
        $region44: #{tpu_custom_call.1} parent=35 // pred_fallthru
          _
        // Predicated region
        $region45: #{tpu_custom_call.1} parent=35 // pred_check
          %p221 = pneg %p85
        $region46: #{tpu_custom_call.1} parent=35 // pred_check_branch
          %223 = sbr.rel (%p221) target = $region48
        $region47: #{tpu_custom_call.1} parent=35 // pred_region
          %224 = dma.done [#allocation10], 576
        $region48: #{tpu_custom_call.1} parent=35 // pred_fallthru
          _
        %s225 = sand.u32 %s30, 1
        %s226 = scalar_lea.sflag [#allocation7], %s225
        %s227 = sand.u32 %s30, 1
        %s228 = smul.addr %s227, 72
        %s229 = scalar_lea.vmem [#allocation6], %s228
        %p230 = pneg %p43
        %p231 = pneg %p40
        %p232 = pneg %p64
        %p233 = pneg %p61
        %p234 = pneg %p85
        %p235 = pneg %p82
        %p236 = pneg %p106
        %p237 = pneg %p103
        %p238 = pneg %p132
        %p239 = pneg %p129
        %s240 = sand.u32 %s119, 1
        %s241 = scalar_lea.sflag [#allocation8], %s240
        %s242 = sand.u32 %s119, 1
        %s243 = smul.addr %s242, 64
        %s244 = scalar_lea.vmem [#allocation12], %s243
        %v247 = vld [vmem:[%s212] sm:$0xf]
        %v248 = vld [vmem:[%s212 + $0x4] sm:$0xf]
        %v249 = vld [vmem:[%s212 + $0x8] sm:$0xf]
        %v250 = vld [vmem:[%s212 + $0xc] sm:$0xf]
        %v251 = vld [vmem:[%s212 + $0x10] sm:$0xf]
        %v252 = vld [vmem:[%s212 + $0x14] sm:$0xf]
        %v253 = vld [vmem:[%s212 + $0x18] sm:$0xf]
        %v254 = vld [vmem:[%s212 + $0x1c] sm:$0xf]
        %v255 = vld [vmem:[%s212 + $0x20] sm:$0xf]
        %v256 = vld [vmem:[%s212 + $0x24] sm:$0xf]
        %v257 = vld [vmem:[%s212 + $0x28] sm:$0xf]
        %v258 = vld [vmem:[%s212 + $0x2c] sm:$0xf]
        %v259 = vld [vmem:[%s212 + $0x30] sm:$0xf]
        %v260 = vld [vmem:[%s212 + $0x34] sm:$0xf]
        %v261 = vld [vmem:[%s212 + $0x38] sm:$0xf]
        %v262 = vld [vmem:[%s212 + $0x3c] sm:$0xf]
        %v263 = vld [vmem:[%s212 + $0x40] sm:$0xf]
        %v264 = vld [vmem:[%s212 + $0x44] sm:$0xf]
        %vm265 = vsmask.f32 3328
        %vm266 = vsmask.f32 7440
        %vm267 = vmor %vm265, %vm266
        %v269 = vshrl.u32 %v249, 16
        %v271 = vrot.slane %v269, 4
        %v272 = vshll.u32 %v249, 16
        %v274 = vrot.slane %v272, 5
        %v275 = vor.u32 %v271, %v274
        %v276 = vrot.slane %v275, 4
        %v278 = vshll.u32 %v250, 16
        %v280 = vrot.slane %v278, 5
        %v281 = vsel %vm267, %v276, %v280
        %v283 = vshrl.u32 %v251, 16
        %v285 = vrot.slane %v283, 4
        %v286 = vshll.u32 %v251, 16
        %v288 = vrot.slane %v286, 5
        %v289 = vor.u32 %v285, %v288
        %v290 = vrot.slane %v289, 4
        %v292 = vshll.u32 %v252, 16
        %v294 = vrot.slane %v292, 5
        %v295 = vsel %vm267, %v290, %v294
        %v297 = vshrl.u32 %v253, 16
        %v299 = vrot.slane %v297, 4
        %v300 = vshll.u32 %v253, 16
        %v302 = vrot.slane %v300, 5
        %v303 = vor.u32 %v299, %v302
        %v304 = vrot.slane %v303, 4
        %v306 = vshll.u32 %v254, 16
        %v308 = vrot.slane %v306, 5
        %v309 = vsel %vm267, %v304, %v308
        %v311 = vshrl.u32 %v255, 16
        %v313 = vrot.slane %v311, 4
        %v314 = vshll.u32 %v255, 16
        %v316 = vrot.slane %v314, 5
        %v317 = vor.u32 %v313, %v316
        %v318 = vrot.slane %v317, 4
        %v320 = vshll.u32 %v256, 16
        %v322 = vrot.slane %v320, 5
        %v323 = vsel %vm267, %v318, %v322
        %v325 = vshrl.u32 %v257, 16
        %v327 = vrot.slane %v325, 4
        %v328 = vshll.u32 %v257, 16
        %v330 = vrot.slane %v328, 5
        %v331 = vor.u32 %v327, %v330
        %v332 = vrot.slane %v331, 4
        %v334 = vshll.u32 %v258, 16
        %v336 = vrot.slane %v334, 5
        %v337 = vsel %vm267, %v332, %v336
        %v339 = vshrl.u32 %v259, 16
        %v341 = vrot.slane %v339, 4
        %v342 = vshll.u32 %v259, 16
        %v344 = vrot.slane %v342, 5
        %v345 = vor.u32 %v341, %v344
        %v346 = vrot.slane %v345, 4
        %v348 = vshll.u32 %v260, 16
        %v350 = vrot.slane %v348, 5
        %v351 = vsel %vm267, %v346, %v350
        %v353 = vshrl.u32 %v261, 16
        %v355 = vrot.slane %v353, 4
        %v356 = vshll.u32 %v261, 16
        %v358 = vrot.slane %v356, 5
        %v359 = vor.u32 %v355, %v358
        %v360 = vrot.slane %v359, 4
        %v362 = vshll.u32 %v262, 16
        %v364 = vrot.slane %v362, 5
        %v365 = vsel %vm267, %v360, %v364
        %v367 = vshrl.u32 %v263, 16
        %v369 = vrot.slane %v367, 4
        %v370 = vshll.u32 %v263, 16
        %v372 = vrot.slane %v370, 5
        %v373 = vor.u32 %v369, %v372
        %v374 = vrot.slane %v373, 4
        %v376 = vshll.u32 %v264, 16
        %v378 = vrot.slane %v376, 5
        %v379 = vsel %vm267, %v374, %v378
        %v380 = vunpack.c.l.b16 %v281
        %v381 = vunpack.c.l.b16 %v295
        %v382 = vunpack.c.l.b16 %v309
        %v383 = vunpack.c.l.b16 %v323
        %v384 = vunpack.c.l.b16 %v337
        %v385 = vunpack.c.l.b16 %v351
        %v386 = vunpack.c.l.b16 %v365
        %v387 = vunpack.c.l.b16 %v379
        %v388 = vpack.c.b16 %v381, %v380
        %v389 = vpack.c.b16 %v383, %v382
        %v390 = vpack.c.b16 %v385, %v384
        %v391 = vpack.c.b16 %v387, %v386
        %vm396 = vcmask 261120
        %397 = vst.msk [vmem:[#allocation3] sm:$0xff] %vm396, %v388
        %398 = vst.msk [vmem:[#allocation3 + $0x8] sm:$0xff] %vm396, %v389
        %399 = vst.msk [vmem:[#allocation3 + $0x10] sm:$0xff] %vm396, %v390
        %400 = vst.msk [vmem:[#allocation3 + $0x18] sm:$0xff] %vm396, %v391
        %v402 = vshrl.u32 %v247, 16
        %v404 = vrot.slane %v402, 4
        %v405 = vshll.u32 %v247, 16
        %v407 = vrot.slane %v405, 5
        %v408 = vor.u32 %v404, %v407
        %v409 = vrot.slane %v408, 4
        %v411 = vshll.u32 %v248, 16
        %v413 = vrot.slane %v411, 5
        %v414 = vsel %vm267, %v409, %v413
        %v415 = vunpack.c.l.b16 %v414
        %v416 = vpack.c.b16 %v380, %v415
        %v417 = vpack.c.b16 %v382, %v381
        %v418 = vpack.c.b16 %v384, %v383
        %v419 = vpack.c.b16 %v386, %v385
        %420 = vrot.lane.b32.xlu0 %v416, 16
        %v421 = vpop.permute.xlu0 %420
        %422 = vrot.lane.b32.xlu0 %v417, 16
        %v423 = vpop.permute.xlu0 %422
        %424 = vrot.lane.b32.xlu0 %v418, 16
        %v425 = vpop.permute.xlu0 %424
        %426 = vrot.lane.b32.xlu0 %v419, 16
        %v427 = vpop.permute.xlu0 %426
        %vm432 = vcmask 392448
        %433 = vst.msk [vmem:[#allocation3] sm:$0xff] %vm432, %v421
        %434 = vst.msk [vmem:[#allocation3 + $0x8] sm:$0xff] %vm432, %v423
        %435 = vst.msk [vmem:[#allocation3 + $0x10] sm:$0xff] %vm432, %v425
        %436 = vst.msk [vmem:[#allocation3 + $0x18] sm:$0xff] %vm432, %v427
        %v445 = vunpack.c.l.b16 %v249
        %v446 = vunpack.c.l.b16 %v251
        %v447 = vunpack.c.l.b16 %v253
        %v448 = vunpack.c.l.b16 %v255
        %v449 = vunpack.c.l.b16 %v257
        %v450 = vunpack.c.l.b16 %v259
        %v451 = vunpack.c.l.b16 %v261
        %v452 = vunpack.c.l.b16 %v263
        %v453 = vpack.c.b16 %v446, %v445
        %v454 = vpack.c.b16 %v448, %v447
        %v455 = vpack.c.b16 %v450, %v449
        %v456 = vpack.c.b16 %v452, %v451
        %457 = vrot.lane.b32.xlu0 %v453, 40
        %v458 = vpop.permute.xlu0 %457
        %459 = vrot.lane.b32.xlu0 %v454, 40
        %v460 = vpop.permute.xlu0 %459
        %461 = vrot.lane.b32.xlu0 %v455, 40
        %v462 = vpop.permute.xlu0 %461
        %463 = vrot.lane.b32.xlu0 %v456, 40
        %v464 = vpop.permute.xlu0 %463
        %vm469 = vcmask 458112
        %470 = vst.msk [vmem:[#allocation3] sm:$0xff] %vm469, %v458
        %471 = vst.msk [vmem:[#allocation3 + $0x8] sm:$0xff] %vm469, %v460
        %472 = vst.msk [vmem:[#allocation3 + $0x10] sm:$0xff] %vm469, %v462
        %473 = vst.msk [vmem:[#allocation3 + $0x18] sm:$0xff] %vm469, %v464
        %474 = vrot.lane.b32.xlu0 %v453, 32
        %v475 = vpop.permute.xlu0 %474
        %476 = vrot.lane.b32.xlu0 %v454, 32
        %v477 = vpop.permute.xlu0 %476
        %478 = vrot.lane.b32.xlu0 %v455, 32
        %v479 = vpop.permute.xlu0 %478
        %480 = vrot.lane.b32.xlu0 %v456, 32
        %v481 = vpop.permute.xlu0 %480
        %vm486 = vcmask 523712
        %487 = vst.msk [vmem:[#allocation3] sm:$0xff] %vm486, %v475
        %488 = vst.msk [vmem:[#allocation3 + $0x8] sm:$0xff] %vm486, %v477
        %489 = vst.msk [vmem:[#allocation3 + $0x10] sm:$0xff] %vm486, %v479
        %490 = vst.msk [vmem:[#allocation3 + $0x18] sm:$0xff] %vm486, %v481
        %v492 = vunpack.c.l.b16 %v247
        %v493 = vpack.c.b16 %v445, %v492
        %v494 = vpack.c.b16 %v447, %v446
        %v495 = vpack.c.b16 %v449, %v448
        %v496 = vpack.c.b16 %v451, %v450
        %497 = vrot.lane.b32.xlu0 %v493, 40
        %v498 = vpop.permute.xlu0 %497
        %499 = vrot.lane.b32.xlu0 %v494, 40
        %v500 = vpop.permute.xlu0 %499
        %501 = vrot.lane.b32.xlu0 %v495, 40
        %v502 = vpop.permute.xlu0 %501
        %503 = vrot.lane.b32.xlu0 %v496, 40
        %v504 = vpop.permute.xlu0 %503
        %vm509 = vcmask 589312
        %510 = vst.msk [vmem:[#allocation3] sm:$0xff] %vm509, %v498
        %511 = vst.msk [vmem:[#allocation3 + $0x8] sm:$0xff] %vm509, %v500
        %512 = vst.msk [vmem:[#allocation3 + $0x10] sm:$0xff] %vm509, %v502
        %513 = vst.msk [vmem:[#allocation3 + $0x18] sm:$0xff] %vm509, %v504
        %v514 = vld [vmem:[#allocation3] sm:$0xff]
        %v515 = vld [vmem:[#allocation3 + $0x8] sm:$0xff]
        %v516 = vld [vmem:[#allocation3 + $0x10] sm:$0xff]
        %v517 = vld [vmem:[#allocation3 + $0x18] sm:$0xff]
        %v518 = vld [vmem:[#allocation9] sm:$0xf]
        %v519 = vld [vmem:[#allocation9 + $0x4] sm:$0xf]
        %v520 = vld [vmem:[#allocation9 + $0x8] sm:$0xf]
        %v521 = vld [vmem:[#allocation9 + $0xc] sm:$0xf]
        %v522 = vld [vmem:[#allocation9 + $0x10] sm:$0xf]
        %v523 = vld [vmem:[#allocation9 + $0x14] sm:$0xf]
        %v524 = vld [vmem:[#allocation9 + $0x18] sm:$0xf]
        %v525 = vld [vmem:[#allocation9 + $0x1c] sm:$0xf]
        %v526 = vld [vmem:[#allocation9 + $0x20] sm:$0xf]
        %v536 = vunpack.c.l.b16 %v518
        %v537 = vunpack.c.l.b16 %v519
        %v538 = vunpack.c.l.b16 %v520
        %v539 = vunpack.c.l.b16 %v521
        %v540 = vunpack.c.l.b16 %v522
        %v541 = vunpack.c.l.b16 %v523
        %v542 = vunpack.c.l.b16 %v524
        %v543 = vunpack.c.l.b16 %v525
        %v544 = vunpack.c.l.b16 %v526
        %v545 = vpack.c.b16 %v537, %v536
        %v546 = vpack.c.b16 %v539, %v538
        %v547 = vpack.c.b16 %v541, %v540
        %v548 = vpack.c.b16 %v543, %v542
        %v549 = vpack.c.b16 %v544, %v544
        %vm554 = vcmask 588800
        %v556 = vsel %vm554, %v514, 0
        %v559 = vsel %vm554, %v515, 0
        %v562 = vsel %vm554, %v516, 0
        %v565 = vsel %vm554, %v517, 0
        %vm567 = vcmask 1043456
        %v569 = vsel %vm567, %v549, 0
        %571 = vmatprep.subr.bf16.mxu0 0
        %572 = vmatpush1.bf16.msra.mxu0 %v545
        %573 = vmatprep.subr.bf16.mxu0 0
        %574 = vmatpush1.bf16.msra.mxu0 %v546
        %575 = vmatprep.subr.bf16.mxu0 0
        %576 = vmatpush1.bf16.msra.mxu0 %v547
        %577 = vmatprep.subr.bf16.mxu0 0
        %578 = vmatpush1.bf16.msra.mxu0 %v548
        %579 = vmatprep.subr.bf16.mxu0 0
        %580 = vmatpush1.bf16.msra.mxu0 %v569
        %581 = vmatprep.subr.bf16.mxu0 0
        %582 = vmatpush1.bf16.msra.mxu0 0
        %583 = vmatprep.subr.bf16.mxu0 0
        %584 = vmatpush1.bf16.msra.mxu0 0
        %585 = vmatprep.subr.bf16.mxu0 0
        %586 = vmatpush1.bf16.msra.mxu0 0
        %587 = vmatprep.subr.bf16.mxu0 0
        %588 = vmatpush1.bf16.msra.mxu0 0
        %589 = vmatprep.subr.bf16.mxu0 0
        %590 = vmatpush1.bf16.msra.mxu0 0
        %591 = vmatprep.subr.bf16.mxu0 0
        %592 = vmatpush1.bf16.msra.mxu0 0
        %593 = vmatprep.subr.bf16.mxu0 0
        %594 = vmatpush1.bf16.msra.mxu0 0
        %595 = vmatprep.subr.bf16.mxu0 0
        %596 = vmatpush1.bf16.msra.mxu0 0
        %597 = vmatprep.subr.bf16.mxu0 0
        %598 = vmatpush1.bf16.msra.mxu0 0
        %599 = vmatprep.subr.bf16.mxu0 0
        %600 = vmatpush1.bf16.msra.mxu0 0
        %601 = vmatprep.subr.bf16.mxu0 0
        %602 = vmatpush1.bf16.msra.mxu0 0
        %603 = vmatprep.mubr.bf16.mxu0 0
        %604 = vmatmul.mubr.bf16.gmra.mrb[0].mxu0 %v556
        %v605 = vpop.f32.mrb[0].mxu0
        %v606 = vadd.f32 0.0, %v605
        %v607 = vpop.f32.mrb[0].mxu0
        %v608 = vpop.f32.mrb[0].mxu0
        %v609 = vadd.f32 0.0, %v608
        %v610 = vpop.f32.mrb[0].mxu0
        %611 = vmatprep.mubr.bf16.mxu0 0
        %612 = vmatmul.mubr.bf16.gmra.mrb[0].mxu0 %v559
        %v613 = vpop.f32.mrb[0].mxu0
        %v614 = vadd.f32 0.0, %v613
        %v615 = vpop.f32.mrb[0].mxu0
        %v616 = vpop.f32.mrb[0].mxu0
        %v617 = vadd.f32 0.0, %v616
        %v618 = vpop.f32.mrb[0].mxu0
        %619 = vmatprep.mubr.bf16.mxu0 0
        %620 = vmatmul.mubr.bf16.gmra.mrb[0].mxu0 %v562
        %v621 = vpop.f32.mrb[0].mxu0
        %v622 = vadd.f32 0.0, %v621
        %v623 = vpop.f32.mrb[0].mxu0
        %v624 = vpop.f32.mrb[0].mxu0
        %v625 = vadd.f32 0.0, %v624
        %v626 = vpop.f32.mrb[0].mxu0
        %627 = vmatprep.mubr.bf16.mxu0 0
        %628 = vmatmul.mubr.bf16.gmra.mrb[0].mxu0 %v565
        %v629 = vpop.f32.mrb[0].mxu0
        %v630 = vadd.f32 0.0, %v629
        %v631 = vpop.f32.mrb[0].mxu0
        %v632 = vpop.f32.mrb[0].mxu0
        %v633 = vadd.f32 0.0, %v632
        %v634 = vpop.f32.mrb[0].mxu0
        %635 = vdwg.mxu0
        %636 = vst [vmem:[#allocation5] sm:$0xff] %v606
        %637 = vst [vmem:[#allocation5 + $0x8] sm:$0xff] %v609
        %638 = vst [vmem:[#allocation5 + $0x10] sm:$0xff] %v614
        %639 = vst [vmem:[#allocation5 + $0x18] sm:$0xff] %v617
        %640 = vst [vmem:[#allocation5 + $0x20] sm:$0xff] %v622
        %641 = vst [vmem:[#allocation5 + $0x28] sm:$0xff] %v625
        %642 = vst [vmem:[#allocation5 + $0x30] sm:$0xff] %v630
        %643 = vst [vmem:[#allocation5 + $0x38] sm:$0xff] %v633
        %vm644 = vcmp.ge.bf16.partialorder %v249, 0
        %vm645 = vcmp.ge.bf16.partialorder %v250, 0
        %vm646 = vcmp.ge.bf16.partialorder %v251, 0
        %vm647 = vcmp.ge.bf16.partialorder %v252, 0
        %vm648 = vcmp.ge.bf16.partialorder %v253, 0
        %vm649 = vcmp.ge.bf16.partialorder %v254, 0
        %vm650 = vcmp.ge.bf16.partialorder %v255, 0
        %vm651 = vcmp.ge.bf16.partialorder %v256, 0
        %vm652 = vcmp.ge.bf16.partialorder %v257, 0
        %vm653 = vcmp.ge.bf16.partialorder %v258, 0
        %vm654 = vcmp.ge.bf16.partialorder %v259, 0
        %vm655 = vcmp.ge.bf16.partialorder %v260, 0
        %vm656 = vcmp.ge.bf16.partialorder %v261, 0
        %vm657 = vcmp.ge.bf16.partialorder %v262, 0
        %vm658 = vcmp.ge.bf16.partialorder %v263, 0
        %vm659 = vcmp.ge.bf16.partialorder %v264, 0
        %v660 = vmul.bf16 %v249, 1009007652
        %v661 = vmul.bf16 %v250, 1009007652
        %v662 = vmul.bf16 %v251, 1009007652
        %v663 = vmul.bf16 %v252, 1009007652
        %v664 = vmul.bf16 %v253, 1009007652
        %v665 = vmul.bf16 %v254, 1009007652
        %v666 = vmul.bf16 %v255, 1009007652
        %v667 = vmul.bf16 %v256, 1009007652
        %v668 = vmul.bf16 %v257, 1009007652
        %v669 = vmul.bf16 %v258, 1009007652
        %v670 = vmul.bf16 %v259, 1009007652
        %v671 = vmul.bf16 %v260, 1009007652
        %v672 = vmul.bf16 %v261, 1009007652
        %v673 = vmul.bf16 %v262, 1009007652
        %v674 = vmul.bf16 %v263, 1009007652
        %v675 = vmul.bf16 %v264, 1009007652
        %v676 = vsel %vm644, %v249, %v660
        %v677 = vsel %vm645, %v250, %v661
        %v678 = vsel %vm646, %v251, %v662
        %v679 = vsel %vm647, %v252, %v663
        %v680 = vsel %vm648, %v253, %v664
        %v681 = vsel %vm649, %v254, %v665
        %v682 = vsel %vm650, %v255, %v666
        %v683 = vsel %vm651, %v256, %v667
        %v684 = vsel %vm652, %v257, %v668
        %v685 = vsel %vm653, %v258, %v669
        %v686 = vsel %vm654, %v259, %v670
        %v687 = vsel %vm655, %v260, %v671
        %v688 = vsel %vm656, %v261, %v672
        %v689 = vsel %vm657, %v262, %v673
        %v690 = vsel %vm658, %v263, %v674
        %v691 = vsel %vm659, %v264, %v675
        %708 = vrot.lane.b32.xlu0 %v676, 120
        %v709 = vpop.permute.xlu0 %708
        %710 = vrot.lane.b32.xlu0 %v677, 120
        %v711 = vpop.permute.xlu0 %710
        %712 = vrot.lane.b32.xlu0 %v678, 120
        %v713 = vpop.permute.xlu0 %712
        %714 = vrot.lane.b32.xlu0 %v679, 120
        %v715 = vpop.permute.xlu0 %714
        %716 = vrot.lane.b32.xlu0 %v680, 120
        %v717 = vpop.permute.xlu0 %716
        %718 = vrot.lane.b32.xlu0 %v681, 120
        %v719 = vpop.permute.xlu0 %718
        %720 = vrot.lane.b32.xlu0 %v682, 120
        %v721 = vpop.permute.xlu0 %720
        %722 = vrot.lane.b32.xlu0 %v683, 120
        %v723 = vpop.permute.xlu0 %722
        %724 = vrot.lane.b32.xlu0 %v684, 120
        %v725 = vpop.permute.xlu0 %724
        %726 = vrot.lane.b32.xlu0 %v685, 120
        %v727 = vpop.permute.xlu0 %726
        %728 = vrot.lane.b32.xlu0 %v686, 120
        %v729 = vpop.permute.xlu0 %728
        %730 = vrot.lane.b32.xlu0 %v687, 120
        %v731 = vpop.permute.xlu0 %730
        %732 = vrot.lane.b32.xlu0 %v688, 120
        %v733 = vpop.permute.xlu0 %732
        %734 = vrot.lane.b32.xlu0 %v689, 120
        %v735 = vpop.permute.xlu0 %734
        %736 = vrot.lane.b32.xlu0 %v690, 120
        %v737 = vpop.permute.xlu0 %736
        %738 = vrot.lane.b32.xlu0 %v691, 120
        %v739 = vpop.permute.xlu0 %738
        %v756 = vmax.bf16 %v676, %v709
        %v757 = vmax.bf16 %v677, %v711
        %v758 = vmax.bf16 %v678, %v713
        %v759 = vmax.bf16 %v679, %v715
        %v760 = vmax.bf16 %v680, %v717
        %v761 = vmax.bf16 %v681, %v719
        %v762 = vmax.bf16 %v682, %v721
        %v763 = vmax.bf16 %v683, %v723
        %v764 = vmax.bf16 %v684, %v725
        %v765 = vmax.bf16 %v685, %v727
        %v766 = vmax.bf16 %v686, %v729
        %v767 = vmax.bf16 %v687, %v731
        %v768 = vmax.bf16 %v688, %v733
        %v769 = vmax.bf16 %v689, %v735
        %v770 = vmax.bf16 %v690, %v737
        %v771 = vmax.bf16 %v691, %v739
        %788 = vrot.lane.b32.xlu0 %v756, 112
        %v789 = vpop.permute.xlu0 %788
        %790 = vrot.lane.b32.xlu0 %v757, 112
        %v791 = vpop.permute.xlu0 %790
        %792 = vrot.lane.b32.xlu0 %v758, 112
        %v793 = vpop.permute.xlu0 %792
        %794 = vrot.lane.b32.xlu0 %v759, 112
        %v795 = vpop.permute.xlu0 %794
        %796 = vrot.lane.b32.xlu0 %v760, 112
        %v797 = vpop.permute.xlu0 %796
        %798 = vrot.lane.b32.xlu0 %v761, 112
        %v799 = vpop.permute.xlu0 %798
        %800 = vrot.lane.b32.xlu0 %v762, 112
        %v801 = vpop.permute.xlu0 %800
        %802 = vrot.lane.b32.xlu0 %v763, 112
        %v803 = vpop.permute.xlu0 %802
        %804 = vrot.lane.b32.xlu0 %v764, 112
        %v805 = vpop.permute.xlu0 %804
        %806 = vrot.lane.b32.xlu0 %v765, 112
        %v807 = vpop.permute.xlu0 %806
        %808 = vrot.lane.b32.xlu0 %v766, 112
        %v809 = vpop.permute.xlu0 %808
        %810 = vrot.lane.b32.xlu0 %v767, 112
        %v811 = vpop.permute.xlu0 %810
        %812 = vrot.lane.b32.xlu0 %v768, 112
        %v813 = vpop.permute.xlu0 %812
        %814 = vrot.lane.b32.xlu0 %v769, 112
        %v815 = vpop.permute.xlu0 %814
        %816 = vrot.lane.b32.xlu0 %v770, 112
        %v817 = vpop.permute.xlu0 %816
        %818 = vrot.lane.b32.xlu0 %v771, 112
        %v819 = vpop.permute.xlu0 %818
        %v836 = vmax.bf16 %v756, %v789
        %v837 = vmax.bf16 %v757, %v791
        %v838 = vmax.bf16 %v758, %v793
        %v839 = vmax.bf16 %v759, %v795
        %v840 = vmax.bf16 %v760, %v797
        %v841 = vmax.bf16 %v761, %v799
        %v842 = vmax.bf16 %v762, %v801
        %v843 = vmax.bf16 %v763, %v803
        %v844 = vmax.bf16 %v764, %v805
        %v845 = vmax.bf16 %v765, %v807
        %v846 = vmax.bf16 %v766, %v809
        %v847 = vmax.bf16 %v767, %v811
        %v848 = vmax.bf16 %v768, %v813
        %v849 = vmax.bf16 %v769, %v815
        %v850 = vmax.bf16 %v770, %v817
        %v851 = vmax.bf16 %v771, %v819
        %vm852 = vcmp.ge.bf16.partialorder %v836, 0
        %vm853 = vcmp.ge.bf16.partialorder %v837, 0
        %vm854 = vcmp.ge.bf16.partialorder %v838, 0
        %vm855 = vcmp.ge.bf16.partialorder %v839, 0
        %vm856 = vcmp.ge.bf16.partialorder %v840, 0
        %vm857 = vcmp.ge.bf16.partialorder %v841, 0
        %vm858 = vcmp.ge.bf16.partialorder %v842, 0
        %vm859 = vcmp.ge.bf16.partialorder %v843, 0
        %vm860 = vcmp.ge.bf16.partialorder %v844, 0
        %vm861 = vcmp.ge.bf16.partialorder %v845, 0
        %vm862 = vcmp.ge.bf16.partialorder %v846, 0
        %vm863 = vcmp.ge.bf16.partialorder %v847, 0
        %vm864 = vcmp.ge.bf16.partialorder %v848, 0
        %vm865 = vcmp.ge.bf16.partialorder %v849, 0
        %vm866 = vcmp.ge.bf16.partialorder %v850, 0
        %vm867 = vcmp.ge.bf16.partialorder %v851, 0
        %v868 = vmul.bf16 %v836, 1009007652
        %v869 = vmul.bf16 %v837, 1009007652
        %v870 = vmul.bf16 %v838, 1009007652
        %v871 = vmul.bf16 %v839, 1009007652
        %v872 = vmul.bf16 %v840, 1009007652
        %v873 = vmul.bf16 %v841, 1009007652
        %v874 = vmul.bf16 %v842, 1009007652
        %v875 = vmul.bf16 %v843, 1009007652
        %v876 = vmul.bf16 %v844, 1009007652
        %v877 = vmul.bf16 %v845, 1009007652
        %v878 = vmul.bf16 %v846, 1009007652
        %v879 = vmul.bf16 %v847, 1009007652
        %v880 = vmul.bf16 %v848, 1009007652
        %v881 = vmul.bf16 %v849, 1009007652
        %v882 = vmul.bf16 %v850, 1009007652
        %v883 = vmul.bf16 %v851, 1009007652
        %v884 = vsel %vm852, %v836, %v868
        %v885 = vsel %vm853, %v837, %v869
        %v886 = vsel %vm854, %v838, %v870
        %v887 = vsel %vm855, %v839, %v871
        %v888 = vsel %vm856, %v840, %v872
        %v889 = vsel %vm857, %v841, %v873
        %v890 = vsel %vm858, %v842, %v874
        %v891 = vsel %vm859, %v843, %v875
        %v892 = vsel %vm860, %v844, %v876
        %v893 = vsel %vm861, %v845, %v877
        %v894 = vsel %vm862, %v846, %v878
        %v895 = vsel %vm863, %v847, %v879
        %v896 = vsel %vm864, %v848, %v880
        %v897 = vsel %vm865, %v849, %v881
        %v898 = vsel %vm866, %v850, %v882
        %v899 = vsel %vm867, %v851, %v883
        %vm900 = vcmask 64512
        %901 = vst.msk [vmem:[#allocation2] sm:$0xff] %vm900, 0
        %s902 = scalar_lea.vmem [#allocation2], 72
        %903 = vst.msk [vmem:[%s902] sm:$0xff] %vm900, 0
        %vm904 = vcmask 57344
        %vm905 = vsmask.f32 256
        %vm906 = vmand %vm904, %vm905
        %v907 = vld [vmem:[#allocation2] sm:$0x1]
        %v908 = vsel %vm906, 0, %v907
        %909 = vst [vmem:[#allocation2] sm:$0x1] %v908
        %v910 = vld [vmem:[#allocation2 + $0x8] sm:$0x1]
        %v911 = vsel %vm906, 0, %v910
        %912 = vst [vmem:[#allocation2 + $0x8] sm:$0x1] %v911
        %v913 = vld [vmem:[#allocation2 + $0x10] sm:$0x1]
        %v914 = vsel %vm906, 0, %v913
        %915 = vst [vmem:[#allocation2 + $0x10] sm:$0x1] %v914
        %v916 = vld [vmem:[#allocation2 + $0x18] sm:$0x1]
        %v917 = vsel %vm906, 0, %v916
        %918 = vst [vmem:[#allocation2 + $0x18] sm:$0x1] %v917
        %v919 = vld [vmem:[#allocation2 + $0x20] sm:$0x1]
        %v920 = vsel %vm906, 0, %v919
        %921 = vst [vmem:[#allocation2 + $0x20] sm:$0x1] %v920
        %v922 = vld [vmem:[#allocation2 + $0x28] sm:$0x1]
        %v923 = vsel %vm906, 0, %v922
        %924 = vst [vmem:[#allocation2 + $0x28] sm:$0x1] %v923
        %v925 = vld [vmem:[#allocation2 + $0x30] sm:$0x1]
        %v926 = vsel %vm906, 0, %v925
        %927 = vst [vmem:[#allocation2 + $0x30] sm:$0x1] %v926
        %v928 = vld [vmem:[#allocation2 + $0x38] sm:$0x1]
        %v929 = vsel %vm906, 0, %v928
        %930 = vst [vmem:[#allocation2 + $0x38] sm:$0x1] %v929
        %v931 = vld [vmem:[#allocation2 + $0x40] sm:$0x1]
        %v932 = vsel %vm906, 0, %v931
        %933 = vst [vmem:[#allocation2 + $0x40] sm:$0x1] %v932
        %v934 = vld [vmem:[#allocation2 + $0x48] sm:$0x1]
        %v935 = vsel %vm906, 0, %v934
        %936 = vst [vmem:[#allocation2 + $0x48] sm:$0x1] %v935
        %vm937 = vcmask 64516
        %vm938 = vsmask.f32 7954
        %vm939 = vmand %vm937, %vm938
        %v940 = vld [vmem:[#allocation2] sm:$0xf0]
        %v941 = vsel %vm939, 0, %v940
        %942 = vst [vmem:[#allocation2] sm:$0xf0] %v941
        %v943 = vld [vmem:[#allocation2 + $0x8] sm:$0xf0]
        %v944 = vsel %vm939, 0, %v943
        %945 = vst [vmem:[#allocation2 + $0x8] sm:$0xf0] %v944
        %v946 = vld [vmem:[#allocation2 + $0x10] sm:$0xf0]
        %v947 = vsel %vm939, 0, %v946
        %948 = vst [vmem:[#allocation2 + $0x10] sm:$0xf0] %v947
        %v949 = vld [vmem:[#allocation2 + $0x18] sm:$0xf0]
        %v950 = vsel %vm939, 0, %v949
        %951 = vst [vmem:[#allocation2 + $0x18] sm:$0xf0] %v950
        %v952 = vld [vmem:[#allocation2 + $0x20] sm:$0xf0]
        %v953 = vsel %vm939, 0, %v952
        %954 = vst [vmem:[#allocation2 + $0x20] sm:$0xf0] %v953
        %v955 = vld [vmem:[#allocation2 + $0x28] sm:$0xf0]
        %v956 = vsel %vm939, 0, %v955
        %957 = vst [vmem:[#allocation2 + $0x28] sm:$0xf0] %v956
        %v958 = vld [vmem:[#allocation2 + $0x30] sm:$0xf0]
        %v959 = vsel %vm939, 0, %v958
        %960 = vst [vmem:[#allocation2 + $0x30] sm:$0xf0] %v959
        %v961 = vld [vmem:[#allocation2 + $0x38] sm:$0xf0]
        %v962 = vsel %vm939, 0, %v961
        %963 = vst [vmem:[#allocation2 + $0x38] sm:$0xf0] %v962
        %v964 = vld [vmem:[#allocation2 + $0x40] sm:$0xf0]
        %v965 = vsel %vm939, 0, %v964
        %966 = vst [vmem:[#allocation2 + $0x40] sm:$0xf0] %v965
        %v967 = vld [vmem:[#allocation2 + $0x48] sm:$0xf0]
        %v968 = vsel %vm939, 0, %v967
        %969 = vst [vmem:[#allocation2 + $0x48] sm:$0xf0] %v968
        %v986 = vunpack.c.l.b16 %v884
        %v987 = vunpack.c.l.b16 %v885
        %v988 = vunpack.c.l.b16 %v886
        %v989 = vunpack.c.l.b16 %v887
        %v990 = vunpack.c.l.b16 %v888
        %v991 = vunpack.c.l.b16 %v889
        %v992 = vunpack.c.l.b16 %v890
        %v993 = vunpack.c.l.b16 %v891
        %v994 = vunpack.c.l.b16 %v892
        %v995 = vunpack.c.l.b16 %v893
        %v996 = vunpack.c.l.b16 %v894
        %v997 = vunpack.c.l.b16 %v895
        %v998 = vunpack.c.l.b16 %v896
        %v999 = vunpack.c.l.b16 %v897
        %v1000 = vunpack.c.l.b16 %v898
        %v1001 = vunpack.c.l.b16 %v899
        %v1002 = vpack.c.b16 %v987, %v986
        %v1003 = vpack.c.b16 %v989, %v988
        %v1004 = vpack.c.b16 %v991, %v990
        %v1005 = vpack.c.b16 %v993, %v992
        %v1006 = vpack.c.b16 %v995, %v994
        %v1007 = vpack.c.b16 %v997, %v996
        %v1008 = vpack.c.b16 %v999, %v998
        %v1009 = vpack.c.b16 %v1001, %v1000
        %s1018 = scalar_lea.vmem [#allocation2], 8
        %vm1019 = vcmask 61440
        %vm1020 = vsmask.f32 4354
        %vm1021 = vmand %vm1019, %vm1020
        %v1022 = vld [vmem:[%s1018] sm:$0x1f]
        %v1023 = vsel %vm1021, %v1002, %v1022
        %1024 = vst [vmem:[%s1018] sm:$0x1f] %v1023
        %v1025 = vld [vmem:[%s1018 + $0x8] sm:$0x1f]
        %v1026 = vsel %vm1021, %v1003, %v1025
        %1027 = vst [vmem:[%s1018 + $0x8] sm:$0x1f] %v1026
        %v1028 = vld [vmem:[%s1018 + $0x10] sm:$0x1f]
        %v1029 = vsel %vm1021, %v1004, %v1028
        %1030 = vst [vmem:[%s1018 + $0x10] sm:$0x1f] %v1029
        %v1031 = vld [vmem:[%s1018 + $0x18] sm:$0x1f]
        %v1032 = vsel %vm1021, %v1005, %v1031
        %1033 = vst [vmem:[%s1018 + $0x18] sm:$0x1f] %v1032
        %v1034 = vld [vmem:[%s1018 + $0x20] sm:$0x1f]
        %v1035 = vsel %vm1021, %v1006, %v1034
        %1036 = vst [vmem:[%s1018 + $0x20] sm:$0x1f] %v1035
        %v1037 = vld [vmem:[%s1018 + $0x28] sm:$0x1f]
        %v1038 = vsel %vm1021, %v1007, %v1037
        %1039 = vst [vmem:[%s1018 + $0x28] sm:$0x1f] %v1038
        %v1040 = vld [vmem:[%s1018 + $0x30] sm:$0x1f]
        %v1041 = vsel %vm1021, %v1008, %v1040
        %1042 = vst [vmem:[%s1018 + $0x30] sm:$0x1f] %v1041
        %v1043 = vld [vmem:[%s1018 + $0x38] sm:$0x1f]
        %v1044 = vsel %vm1021, %v1009, %v1043
        %1045 = vst [vmem:[%s1018 + $0x38] sm:$0x1f] %v1044
        %v1046 = vld [vmem:[#allocation2] sm:$0xf]
        %v1047 = vld [vmem:[#allocation2 + $0x8] sm:$0xf]
        %v1048 = vld [vmem:[#allocation2 + $0x10] sm:$0xf]
        %v1049 = vld [vmem:[#allocation2 + $0x18] sm:$0xf]
        %v1050 = vld [vmem:[#allocation2 + $0x20] sm:$0xf]
        %v1051 = vld [vmem:[#allocation2 + $0x28] sm:$0xf]
        %v1052 = vld [vmem:[#allocation2 + $0x30] sm:$0xf]
        %v1053 = vld [vmem:[#allocation2 + $0x38] sm:$0xf]
        %v1062 = vunpack.c.l.b16 %v1046
        %v1063 = vunpack.c.l.b16 %v1047
        %v1064 = vunpack.c.l.b16 %v1048
        %v1065 = vunpack.c.l.b16 %v1049
        %v1066 = vunpack.c.l.b16 %v1050
        %v1067 = vunpack.c.l.b16 %v1051
        %v1068 = vunpack.c.l.b16 %v1052
        %v1069 = vunpack.c.l.b16 %v1053
        %v1070 = vpack.c.b16 %v1063, %v1062
        %v1071 = vpack.c.b16 %v1065, %v1064
        %v1072 = vpack.c.b16 %v1067, %v1066
        %v1073 = vpack.c.b16 %v1069, %v1068
        %1078 = vst.msk [vmem:[#allocation4] sm:$0xff] %vm900, %v1070
        %1079 = vst.msk [vmem:[#allocation4 + $0x8] sm:$0xff] %vm900, %v1071
        %1080 = vst.msk [vmem:[#allocation4 + $0x10] sm:$0xff] %vm900, %v1072
        %1081 = vst.msk [vmem:[#allocation4 + $0x18] sm:$0xff] %vm900, %v1073
        %v1082 = vld [vmem:[#allocation2] sm:$0x1f]
        %v1083 = vld [vmem:[#allocation2 + $0x8] sm:$0x1f]
        %v1084 = vld [vmem:[#allocation2 + $0x10] sm:$0x1f]
        %v1085 = vld [vmem:[#allocation2 + $0x18] sm:$0x1f]
        %v1086 = vld [vmem:[#allocation2 + $0x20] sm:$0x1f]
        %v1087 = vld [vmem:[#allocation2 + $0x28] sm:$0x1f]
        %v1088 = vld [vmem:[#allocation2 + $0x30] sm:$0x1f]
        %v1089 = vld [vmem:[#allocation2 + $0x38] sm:$0x1f]
        %v1098 = vunpack.c.l.b16 %v1082
        %v1099 = vunpack.c.h.b16 %v1082
        %v1100 = vunpack.c.l.b16 %v1083
        %v1101 = vunpack.c.h.b16 %v1083
        %v1102 = vunpack.c.l.b16 %v1084
        %v1103 = vunpack.c.h.b16 %v1084
        %v1104 = vunpack.c.l.b16 %v1085
        %v1105 = vunpack.c.h.b16 %v1085
        %v1106 = vunpack.c.l.b16 %v1086
        %v1107 = vunpack.c.h.b16 %v1086
        %v1108 = vunpack.c.l.b16 %v1087
        %v1109 = vunpack.c.h.b16 %v1087
        %v1110 = vunpack.c.l.b16 %v1088
        %v1111 = vunpack.c.h.b16 %v1088
        %v1112 = vunpack.c.l.b16 %v1089
        %v1113 = vunpack.c.h.b16 %v1089
        %v1114 = vpack.c.b16 %v1098, %v1098
        %v1115 = vpack.c.b16 %v1099, %v1099
        %v1116 = vpack.c.b16 %v1100, %v1100
        %v1117 = vpack.c.b16 %v1101, %v1101
        %v1118 = vpack.c.b16 %v1102, %v1102
        %v1119 = vpack.c.b16 %v1103, %v1103
        %v1120 = vpack.c.b16 %v1104, %v1104
        %v1121 = vpack.c.b16 %v1105, %v1105
        %v1122 = vpack.c.b16 %v1106, %v1106
        %v1123 = vpack.c.b16 %v1107, %v1107
        %v1124 = vpack.c.b16 %v1108, %v1108
        %v1125 = vpack.c.b16 %v1109, %v1109
        %v1126 = vpack.c.b16 %v1110, %v1110
        %v1127 = vpack.c.b16 %v1111, %v1111
        %v1128 = vpack.c.b16 %v1112, %v1112
        %v1129 = vpack.c.b16 %v1113, %v1113
        %v1131 = vshrl.u32 %v1114, 16
        %v1133 = vrot.slane %v1131, 4
        %v1134 = vshll.u32 %v1114, 16
        %v1136 = vrot.slane %v1134, 5
        %v1137 = vor.u32 %v1133, %v1136
        %v1138 = vrot.slane %v1137, 4
        %v1140 = vshll.u32 %v1115, 16
        %v1142 = vrot.slane %v1140, 5
        %v1143 = vsel %vm267, %v1138, %v1142
        %v1145 = vshrl.u32 %v1116, 16
        %v1147 = vrot.slane %v1145, 4
        %v1148 = vshll.u32 %v1116, 16
        %v1150 = vrot.slane %v1148, 5
        %v1151 = vor.u32 %v1147, %v1150
        %v1152 = vrot.slane %v1151, 4
        %v1154 = vshll.u32 %v1117, 16
        %v1156 = vrot.slane %v1154, 5
        %v1157 = vsel %vm267, %v1152, %v1156
        %v1159 = vshrl.u32 %v1118, 16
        %v1161 = vrot.slane %v1159, 4
        %v1162 = vshll.u32 %v1118, 16
        %v1164 = vrot.slane %v1162, 5
        %v1165 = vor.u32 %v1161, %v1164
        %v1166 = vrot.slane %v1165, 4
        %v1168 = vshll.u32 %v1119, 16
        %v1170 = vrot.slane %v1168, 5
        %v1171 = vsel %vm267, %v1166, %v1170
        %v1173 = vshrl.u32 %v1120, 16
        %v1175 = vrot.slane %v1173, 4
        %v1176 = vshll.u32 %v1120, 16
        %v1178 = vrot.slane %v1176, 5
        %v1179 = vor.u32 %v1175, %v1178
        %v1180 = vrot.slane %v1179, 4
        %v1182 = vshll.u32 %v1121, 16
        %v1184 = vrot.slane %v1182, 5
        %v1185 = vsel %vm267, %v1180, %v1184
        %v1187 = vshrl.u32 %v1122, 16
        %v1189 = vrot.slane %v1187, 4
        %v1190 = vshll.u32 %v1122, 16
        %v1192 = vrot.slane %v1190, 5
        %v1193 = vor.u32 %v1189, %v1192
        %v1194 = vrot.slane %v1193, 4
        %v1196 = vshll.u32 %v1123, 16
        %v1198 = vrot.slane %v1196, 5
        %v1199 = vsel %vm267, %v1194, %v1198
        %v1201 = vshrl.u32 %v1124, 16
        %v1203 = vrot.slane %v1201, 4
        %v1204 = vshll.u32 %v1124, 16
        %v1206 = vrot.slane %v1204, 5
        %v1207 = vor.u32 %v1203, %v1206
        %v1208 = vrot.slane %v1207, 4
        %v1210 = vshll.u32 %v1125, 16
        %v1212 = vrot.slane %v1210, 5
        %v1213 = vsel %vm267, %v1208, %v1212
        %v1215 = vshrl.u32 %v1126, 16
        %v1217 = vrot.slane %v1215, 4
        %v1218 = vshll.u32 %v1126, 16
        %v1220 = vrot.slane %v1218, 5
        %v1221 = vor.u32 %v1217, %v1220
        %v1222 = vrot.slane %v1221, 4
        %v1224 = vshll.u32 %v1127, 16
        %v1226 = vrot.slane %v1224, 5
        %v1227 = vsel %vm267, %v1222, %v1226
        %v1229 = vshrl.u32 %v1128, 16
        %v1231 = vrot.slane %v1229, 4
        %v1232 = vshll.u32 %v1128, 16
        %v1234 = vrot.slane %v1232, 5
        %v1235 = vor.u32 %v1231, %v1234
        %v1236 = vrot.slane %v1235, 4
        %v1238 = vshll.u32 %v1129, 16
        %v1240 = vrot.slane %v1238, 5
        %v1241 = vsel %vm267, %v1236, %v1240
        %v1242 = vunpack.c.l.b16 %v1143
        %v1243 = vunpack.c.l.b16 %v1157
        %v1244 = vunpack.c.l.b16 %v1171
        %v1245 = vunpack.c.l.b16 %v1185
        %v1246 = vunpack.c.l.b16 %v1199
        %v1247 = vunpack.c.l.b16 %v1213
        %v1248 = vunpack.c.l.b16 %v1227
        %v1249 = vunpack.c.l.b16 %v1241
        %v1250 = vpack.c.b16 %v1243, %v1242
        %v1251 = vpack.c.b16 %v1245, %v1244
        %v1252 = vpack.c.b16 %v1247, %v1246
        %v1253 = vpack.c.b16 %v1249, %v1248
        %1254 = vrot.lane.b32.xlu0 %v1250, 8
        %v1255 = vpop.permute.xlu0 %1254
        %1256 = vrot.lane.b32.xlu0 %v1251, 8
        %v1257 = vpop.permute.xlu0 %1256
        %1258 = vrot.lane.b32.xlu0 %v1252, 8
        %v1259 = vpop.permute.xlu0 %1258
        %1260 = vrot.lane.b32.xlu0 %v1253, 8
        %v1261 = vpop.permute.xlu0 %1260
        %vm1266 = vcmask 130112
        %1267 = vst.msk [vmem:[#allocation4] sm:$0xff] %vm1266, %v1255
        %1268 = vst.msk [vmem:[#allocation4 + $0x8] sm:$0xff] %vm1266, %v1257
        %1269 = vst.msk [vmem:[#allocation4 + $0x10] sm:$0xff] %vm1266, %v1259
        %1270 = vst.msk [vmem:[#allocation4 + $0x18] sm:$0xff] %vm1266, %v1261
        %v1271 = vld [vmem:[#allocation2] sm:$0x1e]
        %v1272 = vld [vmem:[#allocation2 + $0x8] sm:$0x1e]
        %v1273 = vld [vmem:[#allocation2 + $0x10] sm:$0x1e]
        %v1274 = vld [vmem:[#allocation2 + $0x18] sm:$0x1e]
        %v1275 = vld [vmem:[#allocation2 + $0x20] sm:$0x1e]
        %v1276 = vld [vmem:[#allocation2 + $0x28] sm:$0x1e]
        %v1277 = vld [vmem:[#allocation2 + $0x30] sm:$0x1e]
        %v1278 = vld [vmem:[#allocation2 + $0x38] sm:$0x1e]
        %v1287 = vunpack.c.l.b16 %v1271
        %v1288 = vunpack.c.h.b16 %v1271
        %v1289 = vunpack.c.l.b16 %v1272
        %v1290 = vunpack.c.h.b16 %v1272
        %v1291 = vunpack.c.l.b16 %v1273
        %v1292 = vunpack.c.h.b16 %v1273
        %v1293 = vunpack.c.l.b16 %v1274
        %v1294 = vunpack.c.h.b16 %v1274
        %v1295 = vunpack.c.l.b16 %v1275
        %v1296 = vunpack.c.h.b16 %v1275
        %v1297 = vunpack.c.l.b16 %v1276
        %v1298 = vunpack.c.h.b16 %v1276
        %v1299 = vunpack.c.l.b16 %v1277
        %v1300 = vunpack.c.h.b16 %v1277
        %v1301 = vunpack.c.l.b16 %v1278
        %v1302 = vunpack.c.h.b16 %v1278
        %v1303 = vpack.c.b16 %v1287, %v1287
        %v1304 = vpack.c.b16 %v1288, %v1288
        %v1305 = vpack.c.b16 %v1289, %v1289
        %v1306 = vpack.c.b16 %v1290, %v1290
        %v1307 = vpack.c.b16 %v1291, %v1291
        %v1308 = vpack.c.b16 %v1292, %v1292
        %v1309 = vpack.c.b16 %v1293, %v1293
        %v1310 = vpack.c.b16 %v1294, %v1294
        %v1311 = vpack.c.b16 %v1295, %v1295
        %v1312 = vpack.c.b16 %v1296, %v1296
        %v1313 = vpack.c.b16 %v1297, %v1297
        %v1314 = vpack.c.b16 %v1298, %v1298
        %v1315 = vpack.c.b16 %v1299, %v1299
        %v1316 = vpack.c.b16 %v1300, %v1300
        %v1317 = vpack.c.b16 %v1301, %v1301
        %v1318 = vpack.c.b16 %v1302, %v1302
        %vm1319 = vcmask 1042432
        %vm1320 = vcmask 1046532
        %vm1321 = vmor %vm1319, %vm1320
        %v1322 = vrot.slane %v1303, 5
        %v1323 = vrot.slane %v1322, 4
        %v1324 = vrot.slane %v1304, 5
        %v1325 = vsel %vm1321, %v1323, %v1324
        %v1326 = vrot.slane %v1305, 5
        %v1327 = vrot.slane %v1326, 4
        %v1328 = vrot.slane %v1306, 5
        %v1329 = vsel %vm1321, %v1327, %v1328
        %v1330 = vrot.slane %v1307, 5
        %v1331 = vrot.slane %v1330, 4
        %v1332 = vrot.slane %v1308, 5
        %v1333 = vsel %vm1321, %v1331, %v1332
        %v1334 = vrot.slane %v1309, 5
        %v1335 = vrot.slane %v1334, 4
        %v1336 = vrot.slane %v1310, 5
        %v1337 = vsel %vm1321, %v1335, %v1336
        %v1338 = vrot.slane %v1311, 5
        %v1339 = vrot.slane %v1338, 4
        %v1340 = vrot.slane %v1312, 5
        %v1341 = vsel %vm1321, %v1339, %v1340
        %v1342 = vrot.slane %v1313, 5
        %v1343 = vrot.slane %v1342, 4
        %v1344 = vrot.slane %v1314, 5
        %v1345 = vsel %vm1321, %v1343, %v1344
        %v1346 = vrot.slane %v1315, 5
        %v1347 = vrot.slane %v1346, 4
        %v1348 = vrot.slane %v1316, 5
        %v1349 = vsel %vm1321, %v1347, %v1348
        %v1350 = vrot.slane %v1317, 5
        %v1351 = vrot.slane %v1350, 4
        %v1352 = vrot.slane %v1318, 5
        %v1353 = vsel %vm1321, %v1351, %v1352
        %v1354 = vunpack.c.l.b16 %v1325
        %v1355 = vunpack.c.l.b16 %v1329
        %v1356 = vunpack.c.l.b16 %v1333
        %v1357 = vunpack.c.l.b16 %v1337
        %v1358 = vunpack.c.l.b16 %v1341
        %v1359 = vunpack.c.l.b16 %v1345
        %v1360 = vunpack.c.l.b16 %v1349
        %v1361 = vunpack.c.l.b16 %v1353
        %v1362 = vpack.c.b16 %v1355, %v1354
        %v1363 = vpack.c.b16 %v1357, %v1356
        %v1364 = vpack.c.b16 %v1359, %v1358
        %v1365 = vpack.c.b16 %v1361, %v1360
        %1366 = vrot.lane.b32.xlu0 %v1362, 16
        %v1367 = vpop.permute.xlu0 %1366
        %1368 = vrot.lane.b32.xlu0 %v1363, 16
        %v1369 = vpop.permute.xlu0 %1368
        %1370 = vrot.lane.b32.xlu0 %v1364, 16
        %v1371 = vpop.permute.xlu0 %1370
        %1372 = vrot.lane.b32.xlu0 %v1365, 16
        %v1373 = vpop.permute.xlu0 %1372
        %vm1378 = vcmask 195712
        %1379 = vst.msk [vmem:[#allocation4] sm:$0xff] %vm1378, %v1367
        %1380 = vst.msk [vmem:[#allocation4 + $0x8] sm:$0xff] %vm1378, %v1369
        %1381 = vst.msk [vmem:[#allocation4 + $0x10] sm:$0xff] %vm1378, %v1371
        %1382 = vst.msk [vmem:[#allocation4 + $0x18] sm:$0xff] %vm1378, %v1373
        %v1383 = vld [vmem:[%s1018] sm:$0xf]
        %v1384 = vld [vmem:[%s1018 + $0x8] sm:$0xf]
        %v1385 = vld [vmem:[%s1018 + $0x10] sm:$0xf]
        %v1386 = vld [vmem:[%s1018 + $0x18] sm:$0xf]
        %v1387 = vld [vmem:[%s1018 + $0x20] sm:$0xf]
        %v1388 = vld [vmem:[%s1018 + $0x28] sm:$0xf]
        %v1389 = vld [vmem:[%s1018 + $0x30] sm:$0xf]
        %v1390 = vld [vmem:[%s1018 + $0x38] sm:$0xf]
        %v1399 = vunpack.c.l.b16 %v1383
        %v1400 = vunpack.c.l.b16 %v1384
        %v1401 = vunpack.c.l.b16 %v1385
        %v1402 = vunpack.c.l.b16 %v1386
        %v1403 = vunpack.c.l.b16 %v1387
        %v1404 = vunpack.c.l.b16 %v1388
        %v1405 = vunpack.c.l.b16 %v1389
        %v1406 = vunpack.c.l.b16 %v1390
        %v1407 = vpack.c.b16 %v1400, %v1399
        %v1408 = vpack.c.b16 %v1402, %v1401
        %v1409 = vpack.c.b16 %v1404, %v1403
        %v1410 = vpack.c.b16 %v1406, %v1405
        %1411 = vrot.lane.b32.xlu0 %v1407, 24
        %v1412 = vpop.permute.xlu0 %1411
        %1413 = vrot.lane.b32.xlu0 %v1408, 24
        %v1414 = vpop.permute.xlu0 %1413
        %1415 = vrot.lane.b32.xlu0 %v1409, 24
        %v1416 = vpop.permute.xlu0 %1415
        %1417 = vrot.lane.b32.xlu0 %v1410, 24
        %v1418 = vpop.permute.xlu0 %1417
        %vm1423 = vcmask 261312
        %1424 = vst.msk [vmem:[#allocation4] sm:$0xff] %vm1423, %v1412
        %1425 = vst.msk [vmem:[#allocation4 + $0x8] sm:$0xff] %vm1423, %v1414
        %1426 = vst.msk [vmem:[#allocation4 + $0x10] sm:$0xff] %vm1423, %v1416
        %1427 = vst.msk [vmem:[#allocation4 + $0x18] sm:$0xff] %vm1423, %v1418
        %v1428 = vld [vmem:[%s1018] sm:$0x1f]
        %v1429 = vld [vmem:[%s1018 + $0x8] sm:$0x1f]
        %v1430 = vld [vmem:[%s1018 + $0x10] sm:$0x1f]
        %v1431 = vld [vmem:[%s1018 + $0x18] sm:$0x1f]
        %v1432 = vld [vmem:[%s1018 + $0x20] sm:$0x1f]
        %v1433 = vld [vmem:[%s1018 + $0x28] sm:$0x1f]
        %v1434 = vld [vmem:[%s1018 + $0x30] sm:$0x1f]
        %v1435 = vld [vmem:[%s1018 + $0x38] sm:$0x1f]
        %v1444 = vunpack.c.l.b16 %v1428
        %v1445 = vunpack.c.h.b16 %v1428
        %v1446 = vunpack.c.l.b16 %v1429
        %v1447 = vunpack.c.h.b16 %v1429
        %v1448 = vunpack.c.l.b16 %v1430
        %v1449 = vunpack.c.h.b16 %v1430
        %v1450 = vunpack.c.l.b16 %v1431
        %v1451 = vunpack.c.h.b16 %v1431
        %v1452 = vunpack.c.l.b16 %v1432
        %v1453 = vunpack.c.h.b16 %v1432
        %v1454 = vunpack.c.l.b16 %v1433
        %v1455 = vunpack.c.h.b16 %v1433
        %v1456 = vunpack.c.l.b16 %v1434
        %v1457 = vunpack.c.h.b16 %v1434
        %v1458 = vunpack.c.l.b16 %v1435
        %v1459 = vunpack.c.h.b16 %v1435
        %v1460 = vpack.c.b16 %v1444, %v1444
        %v1461 = vpack.c.b16 %v1445, %v1445
        %v1462 = vpack.c.b16 %v1446, %v1446
        %v1463 = vpack.c.b16 %v1447, %v1447
        %v1464 = vpack.c.b16 %v1448, %v1448
        %v1465 = vpack.c.b16 %v1449, %v1449
        %v1466 = vpack.c.b16 %v1450, %v1450
        %v1467 = vpack.c.b16 %v1451, %v1451
        %v1468 = vpack.c.b16 %v1452, %v1452
        %v1469 = vpack.c.b16 %v1453, %v1453
        %v1470 = vpack.c.b16 %v1454, %v1454
        %v1471 = vpack.c.b16 %v1455, %v1455
        %v1472 = vpack.c.b16 %v1456, %v1456
        %v1473 = vpack.c.b16 %v1457, %v1457
        %v1474 = vpack.c.b16 %v1458, %v1458
        %v1475 = vpack.c.b16 %v1459, %v1459
        %v1477 = vshrl.u32 %v1460, 16
        %v1479 = vrot.slane %v1477, 4
        %v1480 = vshll.u32 %v1460, 16
        %v1482 = vrot.slane %v1480, 5
        %v1483 = vor.u32 %v1479, %v1482
        %v1484 = vrot.slane %v1483, 4
        %v1486 = vshll.u32 %v1461, 16
        %v1488 = vrot.slane %v1486, 5
        %v1489 = vsel %vm267, %v1484, %v1488
        %v1491 = vshrl.u32 %v1462, 16
        %v1493 = vrot.slane %v1491, 4
        %v1494 = vshll.u32 %v1462, 16
        %v1496 = vrot.slane %v1494, 5
        %v1497 = vor.u32 %v1493, %v1496
        %v1498 = vrot.slane %v1497, 4
        %v1500 = vshll.u32 %v1463, 16
        %v1502 = vrot.slane %v1500, 5
        %v1503 = vsel %vm267, %v1498, %v1502
        %v1505 = vshrl.u32 %v1464, 16
        %v1507 = vrot.slane %v1505, 4
        %v1508 = vshll.u32 %v1464, 16
        %v1510 = vrot.slane %v1508, 5
        %v1511 = vor.u32 %v1507, %v1510
        %v1512 = vrot.slane %v1511, 4
        %v1514 = vshll.u32 %v1465, 16
        %v1516 = vrot.slane %v1514, 5
        %v1517 = vsel %vm267, %v1512, %v1516
        %v1519 = vshrl.u32 %v1466, 16
        %v1521 = vrot.slane %v1519, 4
        %v1522 = vshll.u32 %v1466, 16
        %v1524 = vrot.slane %v1522, 5
        %v1525 = vor.u32 %v1521, %v1524
        %v1526 = vrot.slane %v1525, 4
        %v1528 = vshll.u32 %v1467, 16
        %v1530 = vrot.slane %v1528, 5
        %v1531 = vsel %vm267, %v1526, %v1530
        %v1533 = vshrl.u32 %v1468, 16
        %v1535 = vrot.slane %v1533, 4
        %v1536 = vshll.u32 %v1468, 16
        %v1538 = vrot.slane %v1536, 5
        %v1539 = vor.u32 %v1535, %v1538
        %v1540 = vrot.slane %v1539, 4
        %v1542 = vshll.u32 %v1469, 16
        %v1544 = vrot.slane %v1542, 5
        %v1545 = vsel %vm267, %v1540, %v1544
        %v1547 = vshrl.u32 %v1470, 16
        %v1549 = vrot.slane %v1547, 4
        %v1550 = vshll.u32 %v1470, 16
        %v1552 = vrot.slane %v1550, 5
        %v1553 = vor.u32 %v1549, %v1552
        %v1554 = vrot.slane %v1553, 4
        %v1556 = vshll.u32 %v1471, 16
        %v1558 = vrot.slane %v1556, 5
        %v1559 = vsel %vm267, %v1554, %v1558
        %v1561 = vshrl.u32 %v1472, 16
        %v1563 = vrot.slane %v1561, 4
        %v1564 = vshll.u32 %v1472, 16
        %v1566 = vrot.slane %v1564, 5
        %v1567 = vor.u32 %v1563, %v1566
        %v1568 = vrot.slane %v1567, 4
        %v1570 = vshll.u32 %v1473, 16
        %v1572 = vrot.slane %v1570, 5
        %v1573 = vsel %vm267, %v1568, %v1572
        %v1575 = vshrl.u32 %v1474, 16
        %v1577 = vrot.slane %v1575, 4
        %v1578 = vshll.u32 %v1474, 16
        %v1580 = vrot.slane %v1578, 5
        %v1581 = vor.u32 %v1577, %v1580
        %v1582 = vrot.slane %v1581, 4
        %v1584 = vshll.u32 %v1475, 16
        %v1586 = vrot.slane %v1584, 5
        %v1587 = vsel %vm267, %v1582, %v1586
        %v1588 = vunpack.c.l.b16 %v1489
        %v1589 = vunpack.c.l.b16 %v1503
        %v1590 = vunpack.c.l.b16 %v1517
        %v1591 = vunpack.c.l.b16 %v1531
        %v1592 = vunpack.c.l.b16 %v1545
        %v1593 = vunpack.c.l.b16 %v1559
        %v1594 = vunpack.c.l.b16 %v1573
        %v1595 = vunpack.c.l.b16 %v1587
        %v1596 = vpack.c.b16 %v1589, %v1588
        %v1597 = vpack.c.b16 %v1591, %v1590
        %v1598 = vpack.c.b16 %v1593, %v1592
        %v1599 = vpack.c.b16 %v1595, %v1594
        %1600 = vrot.lane.b32.xlu0 %v1596, 32
        %v1601 = vpop.permute.xlu0 %1600
        %1602 = vrot.lane.b32.xlu0 %v1597, 32
        %v1603 = vpop.permute.xlu0 %1602
        %1604 = vrot.lane.b32.xlu0 %v1598, 32
        %v1605 = vpop.permute.xlu0 %1604
        %1606 = vrot.lane.b32.xlu0 %v1599, 32
        %v1607 = vpop.permute.xlu0 %1606
        %vm1612 = vcmask 326912
        %1613 = vst.msk [vmem:[#allocation4] sm:$0xff] %vm1612, %v1601
        %1614 = vst.msk [vmem:[#allocation4 + $0x8] sm:$0xff] %vm1612, %v1603
        %1615 = vst.msk [vmem:[#allocation4 + $0x10] sm:$0xff] %vm1612, %v1605
        %1616 = vst.msk [vmem:[#allocation4 + $0x18] sm:$0xff] %vm1612, %v1607
        %v1617 = vld [vmem:[%s1018] sm:$0x1e]
        %v1618 = vld [vmem:[%s1018 + $0x8] sm:$0x1e]
        %v1619 = vld [vmem:[%s1018 + $0x10] sm:$0x1e]
        %v1620 = vld [vmem:[%s1018 + $0x18] sm:$0x1e]
        %v1621 = vld [vmem:[%s1018 + $0x20] sm:$0x1e]
        %v1622 = vld [vmem:[%s1018 + $0x28] sm:$0x1e]
        %v1623 = vld [vmem:[%s1018 + $0x30] sm:$0x1e]
        %v1624 = vld [vmem:[%s1018 + $0x38] sm:$0x1e]
        %v1633 = vunpack.c.l.b16 %v1617
        %v1634 = vunpack.c.h.b16 %v1617
        %v1635 = vunpack.c.l.b16 %v1618
        %v1636 = vunpack.c.h.b16 %v1618
        %v1637 = vunpack.c.l.b16 %v1619
        %v1638 = vunpack.c.h.b16 %v1619
        %v1639 = vunpack.c.l.b16 %v1620
        %v1640 = vunpack.c.h.b16 %v1620
        %v1641 = vunpack.c.l.b16 %v1621
        %v1642 = vunpack.c.h.b16 %v1621
        %v1643 = vunpack.c.l.b16 %v1622
        %v1644 = vunpack.c.h.b16 %v1622
        %v1645 = vunpack.c.l.b16 %v1623
        %v1646 = vunpack.c.h.b16 %v1623
        %v1647 = vunpack.c.l.b16 %v1624
        %v1648 = vunpack.c.h.b16 %v1624
        %v1649 = vpack.c.b16 %v1633, %v1633
        %v1650 = vpack.c.b16 %v1634, %v1634
        %v1651 = vpack.c.b16 %v1635, %v1635
        %v1652 = vpack.c.b16 %v1636, %v1636
        %v1653 = vpack.c.b16 %v1637, %v1637
        %v1654 = vpack.c.b16 %v1638, %v1638
        %v1655 = vpack.c.b16 %v1639, %v1639
        %v1656 = vpack.c.b16 %v1640, %v1640
        %v1657 = vpack.c.b16 %v1641, %v1641
        %v1658 = vpack.c.b16 %v1642, %v1642
        %v1659 = vpack.c.b16 %v1643, %v1643
        %v1660 = vpack.c.b16 %v1644, %v1644
        %v1661 = vpack.c.b16 %v1645, %v1645
        %v1662 = vpack.c.b16 %v1646, %v1646
        %v1663 = vpack.c.b16 %v1647, %v1647
        %v1664 = vpack.c.b16 %v1648, %v1648
        %v1665 = vrot.slane %v1649, 5
        %v1666 = vrot.slane %v1665, 4
        %v1667 = vrot.slane %v1650, 5
        %v1668 = vsel %vm1321, %v1666, %v1667
        %v1669 = vrot.slane %v1651, 5
        %v1670 = vrot.slane %v1669, 4
        %v1671 = vrot.slane %v1652, 5
        %v1672 = vsel %vm1321, %v1670, %v1671
        %v1673 = vrot.slane %v1653, 5
        %v1674 = vrot.slane %v1673, 4
        %v1675 = vrot.slane %v1654, 5
        %v1676 = vsel %vm1321, %v1674, %v1675
        %v1677 = vrot.slane %v1655, 5
        %v1678 = vrot.slane %v1677, 4
        %v1679 = vrot.slane %v1656, 5
        %v1680 = vsel %vm1321, %v1678, %v1679
        %v1681 = vrot.slane %v1657, 5
        %v1682 = vrot.slane %v1681, 4
        %v1683 = vrot.slane %v1658, 5
        %v1684 = vsel %vm1321, %v1682, %v1683
        %v1685 = vrot.slane %v1659, 5
        %v1686 = vrot.slane %v1685, 4
        %v1687 = vrot.slane %v1660, 5
        %v1688 = vsel %vm1321, %v1686, %v1687
        %v1689 = vrot.slane %v1661, 5
        %v1690 = vrot.slane %v1689, 4
        %v1691 = vrot.slane %v1662, 5
        %v1692 = vsel %vm1321, %v1690, %v1691
        %v1693 = vrot.slane %v1663, 5
        %v1694 = vrot.slane %v1693, 4
        %v1695 = vrot.slane %v1664, 5
        %v1696 = vsel %vm1321, %v1694, %v1695
        %v1697 = vunpack.c.l.b16 %v1668
        %v1698 = vunpack.c.l.b16 %v1672
        %v1699 = vunpack.c.l.b16 %v1676
        %v1700 = vunpack.c.l.b16 %v1680
        %v1701 = vunpack.c.l.b16 %v1684
        %v1702 = vunpack.c.l.b16 %v1688
        %v1703 = vunpack.c.l.b16 %v1692
        %v1704 = vunpack.c.l.b16 %v1696
        %v1705 = vpack.c.b16 %v1698, %v1697
        %v1706 = vpack.c.b16 %v1700, %v1699
        %v1707 = vpack.c.b16 %v1702, %v1701
        %v1708 = vpack.c.b16 %v1704, %v1703
        %1709 = vrot.lane.b32.xlu0 %v1705, 40
        %v1710 = vpop.permute.xlu0 %1709
        %1711 = vrot.lane.b32.xlu0 %v1706, 40
        %v1712 = vpop.permute.xlu0 %1711
        %1713 = vrot.lane.b32.xlu0 %v1707, 40
        %v1714 = vpop.permute.xlu0 %1713
        %1715 = vrot.lane.b32.xlu0 %v1708, 40
        %v1716 = vpop.permute.xlu0 %1715
        %vm1721 = vcmask 392512
        %1722 = vst.msk [vmem:[#allocation4] sm:$0xff] %vm1721, %v1710
        %1723 = vst.msk [vmem:[#allocation4 + $0x8] sm:$0xff] %vm1721, %v1712
        %1724 = vst.msk [vmem:[#allocation4 + $0x10] sm:$0xff] %vm1721, %v1714
        %1725 = vst.msk [vmem:[#allocation4 + $0x18] sm:$0xff] %vm1721, %v1716
        %s1726 = scalar_lea.vmem [#allocation2], 16
        %v1727 = vld [vmem:[%s1726] sm:$0xf]
        %v1728 = vld [vmem:[%s1726 + $0x8] sm:$0xf]
        %v1729 = vld [vmem:[%s1726 + $0x10] sm:$0xf]
        %v1730 = vld [vmem:[%s1726 + $0x18] sm:$0xf]
        %v1731 = vld [vmem:[%s1726 + $0x20] sm:$0xf]
        %v1732 = vld [vmem:[%s1726 + $0x28] sm:$0xf]
        %v1733 = vld [vmem:[%s1726 + $0x30] sm:$0xf]
        %v1734 = vld [vmem:[%s1726 + $0x38] sm:$0xf]
        %v1743 = vunpack.c.l.b16 %v1727
        %v1744 = vunpack.c.l.b16 %v1728
        %v1745 = vunpack.c.l.b16 %v1729
        %v1746 = vunpack.c.l.b16 %v1730
        %v1747 = vunpack.c.l.b16 %v1731
        %v1748 = vunpack.c.l.b16 %v1732
        %v1749 = vunpack.c.l.b16 %v1733
        %v1750 = vunpack.c.l.b16 %v1734
        %v1751 = vpack.c.b16 %v1744, %v1743
        %v1752 = vpack.c.b16 %v1746, %v1745
        %v1753 = vpack.c.b16 %v1748, %v1747
        %v1754 = vpack.c.b16 %v1750, %v1749
        %1755 = vrot.lane.b32.xlu0 %v1751, 48
        %v1756 = vpop.permute.xlu0 %1755
        %1757 = vrot.lane.b32.xlu0 %v1752, 48
        %v1758 = vpop.permute.xlu0 %1757
        %1759 = vrot.lane.b32.xlu0 %v1753, 48
        %v1760 = vpop.permute.xlu0 %1759
        %1761 = vrot.lane.b32.xlu0 %v1754, 48
        %v1762 = vpop.permute.xlu0 %1761
        %1767 = vst.msk [vmem:[#allocation4] sm:$0xff] %vm469, %v1756
        %1768 = vst.msk [vmem:[#allocation4 + $0x8] sm:$0xff] %vm469, %v1758
        %1769 = vst.msk [vmem:[#allocation4 + $0x10] sm:$0xff] %vm469, %v1760
        %1770 = vst.msk [vmem:[#allocation4 + $0x18] sm:$0xff] %vm469, %v1762
        %v1771 = vld [vmem:[%s1726] sm:$0x1f]
        %v1772 = vld [vmem:[%s1726 + $0x8] sm:$0x1f]
        %v1773 = vld [vmem:[%s1726 + $0x10] sm:$0x1f]
        %v1774 = vld [vmem:[%s1726 + $0x18] sm:$0x1f]
        %v1775 = vld [vmem:[%s1726 + $0x20] sm:$0x1f]
        %v1776 = vld [vmem:[%s1726 + $0x28] sm:$0x1f]
        %v1777 = vld [vmem:[%s1726 + $0x30] sm:$0x1f]
        %v1778 = vld [vmem:[%s1726 + $0x38] sm:$0x1f]
        %v1787 = vunpack.c.l.b16 %v1771
        %v1788 = vunpack.c.h.b16 %v1771
        %v1789 = vunpack.c.l.b16 %v1772
        %v1790 = vunpack.c.h.b16 %v1772
        %v1791 = vunpack.c.l.b16 %v1773
        %v1792 = vunpack.c.h.b16 %v1773
        %v1793 = vunpack.c.l.b16 %v1774
        %v1794 = vunpack.c.h.b16 %v1774
        %v1795 = vunpack.c.l.b16 %v1775
        %v1796 = vunpack.c.h.b16 %v1775
        %v1797 = vunpack.c.l.b16 %v1776
        %v1798 = vunpack.c.h.b16 %v1776
        %v1799 = vunpack.c.l.b16 %v1777
        %v1800 = vunpack.c.h.b16 %v1777
        %v1801 = vunpack.c.l.b16 %v1778
        %v1802 = vunpack.c.h.b16 %v1778
        %v1803 = vpack.c.b16 %v1787, %v1787
        %v1804 = vpack.c.b16 %v1788, %v1788
        %v1805 = vpack.c.b16 %v1789, %v1789
        %v1806 = vpack.c.b16 %v1790, %v1790
        %v1807 = vpack.c.b16 %v1791, %v1791
        %v1808 = vpack.c.b16 %v1792, %v1792
        %v1809 = vpack.c.b16 %v1793, %v1793
        %v1810 = vpack.c.b16 %v1794, %v1794
        %v1811 = vpack.c.b16 %v1795, %v1795
        %v1812 = vpack.c.b16 %v1796, %v1796
        %v1813 = vpack.c.b16 %v1797, %v1797
        %v1814 = vpack.c.b16 %v1798, %v1798
        %v1815 = vpack.c.b16 %v1799, %v1799
        %v1816 = vpack.c.b16 %v1800, %v1800
        %v1817 = vpack.c.b16 %v1801, %v1801
        %v1818 = vpack.c.b16 %v1802, %v1802
        %v1820 = vshrl.u32 %v1803, 16
        %v1822 = vrot.slane %v1820, 4
        %v1823 = vshll.u32 %v1803, 16
        %v1825 = vrot.slane %v1823, 5
        %v1826 = vor.u32 %v1822, %v1825
        %v1827 = vrot.slane %v1826, 4
        %v1829 = vshll.u32 %v1804, 16
        %v1831 = vrot.slane %v1829, 5
        %v1832 = vsel %vm267, %v1827, %v1831
        %v1834 = vshrl.u32 %v1805, 16
        %v1836 = vrot.slane %v1834, 4
        %v1837 = vshll.u32 %v1805, 16
        %v1839 = vrot.slane %v1837, 5
        %v1840 = vor.u32 %v1836, %v1839
        %v1841 = vrot.slane %v1840, 4
        %v1843 = vshll.u32 %v1806, 16
        %v1845 = vrot.slane %v1843, 5
        %v1846 = vsel %vm267, %v1841, %v1845
        %v1848 = vshrl.u32 %v1807, 16
        %v1850 = vrot.slane %v1848, 4
        %v1851 = vshll.u32 %v1807, 16
        %v1853 = vrot.slane %v1851, 5
        %v1854 = vor.u32 %v1850, %v1853
        %v1855 = vrot.slane %v1854, 4
        %v1857 = vshll.u32 %v1808, 16
        %v1859 = vrot.slane %v1857, 5
        %v1860 = vsel %vm267, %v1855, %v1859
        %v1862 = vshrl.u32 %v1809, 16
        %v1864 = vrot.slane %v1862, 4
        %v1865 = vshll.u32 %v1809, 16
        %v1867 = vrot.slane %v1865, 5
        %v1868 = vor.u32 %v1864, %v1867
        %v1869 = vrot.slane %v1868, 4
        %v1871 = vshll.u32 %v1810, 16
        %v1873 = vrot.slane %v1871, 5
        %v1874 = vsel %vm267, %v1869, %v1873
        %v1876 = vshrl.u32 %v1811, 16
        %v1878 = vrot.slane %v1876, 4
        %v1879 = vshll.u32 %v1811, 16
        %v1881 = vrot.slane %v1879, 5
        %v1882 = vor.u32 %v1878, %v1881
        %v1883 = vrot.slane %v1882, 4
        %v1885 = vshll.u32 %v1812, 16
        %v1887 = vrot.slane %v1885, 5
        %v1888 = vsel %vm267, %v1883, %v1887
        %v1890 = vshrl.u32 %v1813, 16
        %v1892 = vrot.slane %v1890, 4
        %v1893 = vshll.u32 %v1813, 16
        %v1895 = vrot.slane %v1893, 5
        %v1896 = vor.u32 %v1892, %v1895
        %v1897 = vrot.slane %v1896, 4
        %v1899 = vshll.u32 %v1814, 16
        %v1901 = vrot.slane %v1899, 5
        %v1902 = vsel %vm267, %v1897, %v1901
        %v1904 = vshrl.u32 %v1815, 16
        %v1906 = vrot.slane %v1904, 4
        %v1907 = vshll.u32 %v1815, 16
        %v1909 = vrot.slane %v1907, 5
        %v1910 = vor.u32 %v1906, %v1909
        %v1911 = vrot.slane %v1910, 4
        %v1913 = vshll.u32 %v1816, 16
        %v1915 = vrot.slane %v1913, 5
        %v1916 = vsel %vm267, %v1911, %v1915
        %v1918 = vshrl.u32 %v1817, 16
        %v1920 = vrot.slane %v1918, 4
        %v1921 = vshll.u32 %v1817, 16
        %v1923 = vrot.slane %v1921, 5
        %v1924 = vor.u32 %v1920, %v1923
        %v1925 = vrot.slane %v1924, 4
        %v1927 = vshll.u32 %v1818, 16
        %v1929 = vrot.slane %v1927, 5
        %v1930 = vsel %vm267, %v1925, %v1929
        %v1931 = vunpack.c.l.b16 %v1832
        %v1932 = vunpack.c.l.b16 %v1846
        %v1933 = vunpack.c.l.b16 %v1860
        %v1934 = vunpack.c.l.b16 %v1874
        %v1935 = vunpack.c.l.b16 %v1888
        %v1936 = vunpack.c.l.b16 %v1902
        %v1937 = vunpack.c.l.b16 %v1916
        %v1938 = vunpack.c.l.b16 %v1930
        %v1939 = vpack.c.b16 %v1932, %v1931
        %v1940 = vpack.c.b16 %v1934, %v1933
        %v1941 = vpack.c.b16 %v1936, %v1935
        %v1942 = vpack.c.b16 %v1938, %v1937
        %1943 = vrot.lane.b32.xlu0 %v1939, 56
        %v1944 = vpop.permute.xlu0 %1943
        %1945 = vrot.lane.b32.xlu0 %v1940, 56
        %v1946 = vpop.permute.xlu0 %1945
        %1947 = vrot.lane.b32.xlu0 %v1941, 56
        %v1948 = vpop.permute.xlu0 %1947
        %1949 = vrot.lane.b32.xlu0 %v1942, 56
        %v1950 = vpop.permute.xlu0 %1949
        %1955 = vst.msk [vmem:[#allocation4] sm:$0xff] %vm486, %v1944
        %1956 = vst.msk [vmem:[#allocation4 + $0x8] sm:$0xff] %vm486, %v1946
        %1957 = vst.msk [vmem:[#allocation4 + $0x10] sm:$0xff] %vm486, %v1948
        %1958 = vst.msk [vmem:[#allocation4 + $0x18] sm:$0xff] %vm486, %v1950
        %v1959 = vld [vmem:[%s1726] sm:$0x1e]
        %v1960 = vld [vmem:[%s1726 + $0x8] sm:$0x1e]
        %v1961 = vld [vmem:[%s1726 + $0x10] sm:$0x1e]
        %v1962 = vld [vmem:[%s1726 + $0x18] sm:$0x1e]
        %v1963 = vld [vmem:[%s1726 + $0x20] sm:$0x1e]
        %v1964 = vld [vmem:[%s1726 + $0x28] sm:$0x1e]
        %v1965 = vld [vmem:[%s1726 + $0x30] sm:$0x1e]
        %v1966 = vld [vmem:[%s1726 + $0x38] sm:$0x1e]
        %v1975 = vunpack.c.l.b16 %v1959
        %v1976 = vunpack.c.h.b16 %v1959
        %v1977 = vunpack.c.l.b16 %v1960
        %v1978 = vunpack.c.h.b16 %v1960
        %v1979 = vunpack.c.l.b16 %v1961
        %v1980 = vunpack.c.h.b16 %v1961
        %v1981 = vunpack.c.l.b16 %v1962
        %v1982 = vunpack.c.h.b16 %v1962
        %v1983 = vunpack.c.l.b16 %v1963
        %v1984 = vunpack.c.h.b16 %v1963
        %v1985 = vunpack.c.l.b16 %v1964
        %v1986 = vunpack.c.h.b16 %v1964
        %v1987 = vunpack.c.l.b16 %v1965
        %v1988 = vunpack.c.h.b16 %v1965
        %v1989 = vunpack.c.l.b16 %v1966
        %v1990 = vunpack.c.h.b16 %v1966
        %v1991 = vpack.c.b16 %v1975, %v1975
        %v1992 = vpack.c.b16 %v1976, %v1976
        %v1993 = vpack.c.b16 %v1977, %v1977
        %v1994 = vpack.c.b16 %v1978, %v1978
        %v1995 = vpack.c.b16 %v1979, %v1979
        %v1996 = vpack.c.b16 %v1980, %v1980
        %v1997 = vpack.c.b16 %v1981, %v1981
        %v1998 = vpack.c.b16 %v1982, %v1982
        %v1999 = vpack.c.b16 %v1983, %v1983
        %v2000 = vpack.c.b16 %v1984, %v1984
        %v2001 = vpack.c.b16 %v1985, %v1985
        %v2002 = vpack.c.b16 %v1986, %v1986
        %v2003 = vpack.c.b16 %v1987, %v1987
        %v2004 = vpack.c.b16 %v1988, %v1988
        %v2005 = vpack.c.b16 %v1989, %v1989
        %v2006 = vpack.c.b16 %v1990, %v1990
        %v2007 = vrot.slane %v1991, 5
        %v2008 = vrot.slane %v2007, 4
        %v2009 = vrot.slane %v1992, 5
        %v2010 = vsel %vm1321, %v2008, %v2009
        %v2011 = vrot.slane %v1993, 5
        %v2012 = vrot.slane %v2011, 4
        %v2013 = vrot.slane %v1994, 5
        %v2014 = vsel %vm1321, %v2012, %v2013
        %v2015 = vrot.slane %v1995, 5
        %v2016 = vrot.slane %v2015, 4
        %v2017 = vrot.slane %v1996, 5
        %v2018 = vsel %vm1321, %v2016, %v2017
        %v2019 = vrot.slane %v1997, 5
        %v2020 = vrot.slane %v2019, 4
        %v2021 = vrot.slane %v1998, 5
        %v2022 = vsel %vm1321, %v2020, %v2021
        %v2023 = vrot.slane %v1999, 5
        %v2024 = vrot.slane %v2023, 4
        %v2025 = vrot.slane %v2000, 5
        %v2026 = vsel %vm1321, %v2024, %v2025
        %v2027 = vrot.slane %v2001, 5
        %v2028 = vrot.slane %v2027, 4
        %v2029 = vrot.slane %v2002, 5
        %v2030 = vsel %vm1321, %v2028, %v2029
        %v2031 = vrot.slane %v2003, 5
        %v2032 = vrot.slane %v2031, 4
        %v2033 = vrot.slane %v2004, 5
        %v2034 = vsel %vm1321, %v2032, %v2033
        %v2035 = vrot.slane %v2005, 5
        %v2036 = vrot.slane %v2035, 4
        %v2037 = vrot.slane %v2006, 5
        %v2038 = vsel %vm1321, %v2036, %v2037
        %v2039 = vunpack.c.l.b16 %v2010
        %v2040 = vunpack.c.l.b16 %v2014
        %v2041 = vunpack.c.l.b16 %v2018
        %v2042 = vunpack.c.l.b16 %v2022
        %v2043 = vunpack.c.l.b16 %v2026
        %v2044 = vunpack.c.l.b16 %v2030
        %v2045 = vunpack.c.l.b16 %v2034
        %v2046 = vunpack.c.l.b16 %v2038
        %v2047 = vpack.c.b16 %v2040, %v2039
        %v2048 = vpack.c.b16 %v2042, %v2041
        %v2049 = vpack.c.b16 %v2044, %v2043
        %v2050 = vpack.c.b16 %v2046, %v2045
        %2051 = vrot.lane.b32.xlu0 %v2047, 64
        %v2052 = vpop.permute.xlu0 %2051
        %2053 = vrot.lane.b32.xlu0 %v2048, 64
        %v2054 = vpop.permute.xlu0 %2053
        %2055 = vrot.lane.b32.xlu0 %v2049, 64
        %v2056 = vpop.permute.xlu0 %2055
        %2057 = vrot.lane.b32.xlu0 %v2050, 64
        %v2058 = vpop.permute.xlu0 %2057
        %2063 = vst.msk [vmem:[#allocation4] sm:$0xff] %vm509, %v2052
        %2064 = vst.msk [vmem:[#allocation4 + $0x8] sm:$0xff] %vm509, %v2054
        %2065 = vst.msk [vmem:[#allocation4 + $0x10] sm:$0xff] %vm509, %v2056
        %2066 = vst.msk [vmem:[#allocation4 + $0x18] sm:$0xff] %vm509, %v2058
        %v2067 = vld [vmem:[#allocation5] sm:$0xff]
        %v2068 = vld [vmem:[#allocation5 + $0x8] sm:$0xff]
        %v2069 = vld [vmem:[#allocation5 + $0x10] sm:$0xff]
        %v2070 = vld [vmem:[#allocation5 + $0x18] sm:$0xff]
        %v2071 = vld [vmem:[#allocation5 + $0x20] sm:$0xff]
        %v2072 = vld [vmem:[#allocation5 + $0x28] sm:$0xff]
        %v2073 = vld [vmem:[#allocation5 + $0x30] sm:$0xff]
        %v2074 = vld [vmem:[#allocation5 + $0x38] sm:$0xff]
        %v2075 = vld [vmem:[#allocation4] sm:$0xff]
        %v2076 = vld [vmem:[#allocation4 + $0x8] sm:$0xff]
        %v2077 = vld [vmem:[#allocation4 + $0x10] sm:$0xff]
        %v2078 = vld [vmem:[#allocation4 + $0x18] sm:$0xff]
        %v2079 = vld [vmem:[#allocation11] sm:$0xf]
        %v2080 = vld [vmem:[#allocation11 + $0x4] sm:$0xf]
        %v2081 = vld [vmem:[#allocation11 + $0x8] sm:$0xf]
        %v2082 = vld [vmem:[#allocation11 + $0xc] sm:$0xf]
        %v2083 = vld [vmem:[#allocation11 + $0x10] sm:$0xf]
        %v2084 = vld [vmem:[#allocation11 + $0x14] sm:$0xf]
        %v2085 = vld [vmem:[#allocation11 + $0x18] sm:$0xf]
        %v2086 = vld [vmem:[#allocation11 + $0x1c] sm:$0xf]
        %v2087 = vld [vmem:[#allocation11 + $0x20] sm:$0xf]
        %v2097 = vunpack.c.l.b16 %v2079
        %v2098 = vunpack.c.l.b16 %v2080
        %v2099 = vunpack.c.l.b16 %v2081
        %v2100 = vunpack.c.l.b16 %v2082
        %v2101 = vunpack.c.l.b16 %v2083
        %v2102 = vunpack.c.l.b16 %v2084
        %v2103 = vunpack.c.l.b16 %v2085
        %v2104 = vunpack.c.l.b16 %v2086
        %v2105 = vunpack.c.l.b16 %v2087
        %v2106 = vpack.c.b16 %v2098, %v2097
        %v2107 = vpack.c.b16 %v2100, %v2099
        %v2108 = vpack.c.b16 %v2102, %v2101
        %v2109 = vpack.c.b16 %v2104, %v2103
        %v2110 = vpack.c.b16 %v2105, %v2105
        %v2116 = vsel %vm554, %v2075, 0
        %v2119 = vsel %vm554, %v2076, 0
        %v2122 = vsel %vm554, %v2077, 0
        %v2125 = vsel %vm554, %v2078, 0
        %v2128 = vsel %vm567, %v2110, 0
        %2130 = vmatprep.subr.bf16.mxu0 0
        %2131 = vmatpush1.bf16.msra.mxu0 %v2106
        %2132 = vmatprep.subr.bf16.mxu0 0
        %2133 = vmatpush1.bf16.msra.mxu0 %v2107
        %2134 = vmatprep.subr.bf16.mxu0 0
        %2135 = vmatpush1.bf16.msra.mxu0 %v2108
        %2136 = vmatprep.subr.bf16.mxu0 0
        %2137 = vmatpush1.bf16.msra.mxu0 %v2109
        %2138 = vmatprep.subr.bf16.mxu0 0
        %2139 = vmatpush1.bf16.msra.mxu0 %v2128
        %2140 = vmatprep.subr.bf16.mxu0 0
        %2141 = vmatpush1.bf16.msra.mxu0 0
        %2142 = vmatprep.subr.bf16.mxu0 0
        %2143 = vmatpush1.bf16.msra.mxu0 0
        %2144 = vmatprep.subr.bf16.mxu0 0
        %2145 = vmatpush1.bf16.msra.mxu0 0
        %2146 = vmatprep.subr.bf16.mxu0 0
        %2147 = vmatpush1.bf16.msra.mxu0 0
        %2148 = vmatprep.subr.bf16.mxu0 0
        %2149 = vmatpush1.bf16.msra.mxu0 0
        %2150 = vmatprep.subr.bf16.mxu0 0
        %2151 = vmatpush1.bf16.msra.mxu0 0
        %2152 = vmatprep.subr.bf16.mxu0 0
        %2153 = vmatpush1.bf16.msra.mxu0 0
        %2154 = vmatprep.subr.bf16.mxu0 0
        %2155 = vmatpush1.bf16.msra.mxu0 0
        %2156 = vmatprep.subr.bf16.mxu0 0
        %2157 = vmatpush1.bf16.msra.mxu0 0
        %2158 = vmatprep.subr.bf16.mxu0 0
        %2159 = vmatpush1.bf16.msra.mxu0 0
        %2160 = vmatprep.subr.bf16.mxu0 0
        %2161 = vmatpush1.bf16.msra.mxu0 0
        %2162 = vmatprep.mubr.bf16.mxu0 0
        %2163 = vmatmul.mubr.bf16.gmra.mrb[0].mxu0 %v2116
        %v2164 = vpop.f32.mrb[0].mxu0
        %v2165 = vadd.f32 0.0, %v2164
        %v2166 = vpop.f32.mrb[0].mxu0
        %v2167 = vpop.f32.mrb[0].mxu0
        %v2168 = vadd.f32 0.0, %v2167
        %v2169 = vpop.f32.mrb[0].mxu0
        %2170 = vmatprep.mubr.bf16.mxu0 0
        %2171 = vmatmul.mubr.bf16.gmra.mrb[0].mxu0 %v2119
        %v2172 = vpop.f32.mrb[0].mxu0
        %v2173 = vadd.f32 0.0, %v2172
        %v2174 = vpop.f32.mrb[0].mxu0
        %v2175 = vpop.f32.mrb[0].mxu0
        %v2176 = vadd.f32 0.0, %v2175
        %v2177 = vpop.f32.mrb[0].mxu0
        %2178 = vmatprep.mubr.bf16.mxu0 0
        %2179 = vmatmul.mubr.bf16.gmra.mrb[0].mxu0 %v2122
        %v2180 = vpop.f32.mrb[0].mxu0
        %v2181 = vadd.f32 0.0, %v2180
        %v2182 = vpop.f32.mrb[0].mxu0
        %v2183 = vpop.f32.mrb[0].mxu0
        %v2184 = vadd.f32 0.0, %v2183
        %v2185 = vpop.f32.mrb[0].mxu0
        %2186 = vmatprep.mubr.bf16.mxu0 0
        %2187 = vmatmul.mubr.bf16.gmra.mrb[0].mxu0 %v2125
        %v2188 = vpop.f32.mrb[0].mxu0
        %v2189 = vadd.f32 0.0, %v2188
        %v2190 = vpop.f32.mrb[0].mxu0
        %v2191 = vpop.f32.mrb[0].mxu0
        %v2192 = vadd.f32 0.0, %v2191
        %v2193 = vpop.f32.mrb[0].mxu0
        %2194 = vdwg.mxu0
        %v2195 = vadd.f32 %v2067, %v2165
        %v2196 = vadd.f32 %v2068, %v2168
        %v2197 = vadd.f32 %v2069, %v2173
        %v2198 = vadd.f32 %v2070, %v2176
        %v2199 = vadd.f32 %v2071, %v2181
        %v2200 = vadd.f32 %v2072, %v2184
        %v2201 = vadd.f32 %v2073, %v2189
        %v2202 = vadd.f32 %v2074, %v2192
        %2203 = vst [vmem:[#allocation5] sm:$0xff] %v2195
        %2204 = vst [vmem:[#allocation5 + $0x8] sm:$0xff] %v2196
        %2205 = vst [vmem:[#allocation5 + $0x10] sm:$0xff] %v2197
        %2206 = vst [vmem:[#allocation5 + $0x18] sm:$0xff] %v2198
        %2207 = vst [vmem:[#allocation5 + $0x20] sm:$0xff] %v2199
        %2208 = vst [vmem:[#allocation5 + $0x28] sm:$0xff] %v2200
        %2209 = vst [vmem:[#allocation5 + $0x30] sm:$0xff] %v2201
        %2210 = vst [vmem:[#allocation5 + $0x38] sm:$0xff] %v2202
        %v2211 = vld [vmem:[#allocation5] sm:$0xff]
        %v2212 = vld [vmem:[#allocation5 + $0x8] sm:$0xff]
        %v2213 = vld [vmem:[#allocation5 + $0x10] sm:$0xff]
        %v2214 = vld [vmem:[#allocation5 + $0x18] sm:$0xff]
        %v2215 = vld [vmem:[#allocation5 + $0x20] sm:$0xff]
        %v2216 = vld [vmem:[#allocation5 + $0x28] sm:$0xff]
        %v2217 = vld [vmem:[#allocation5 + $0x30] sm:$0xff]
        %v2218 = vld [vmem:[#allocation5 + $0x38] sm:$0xff]
        %v2219 = vld [vmem:[%s3] sm:$0x1]
        %v2221 = vlaneseq
        %v2222 = vshrl.u32 %v2221, 7
        %v2223 = vsub.s32 0, %v2222
        %v2224 = vrot.slane %v2219, %v2223
        %v2226 = vadd.f32 %v2211, %v2224
        %v2227 = vadd.f32 %v2212, %v2224
        %v2228 = vadd.f32 %v2213, %v2224
        %v2229 = vadd.f32 %v2214, %v2224
        %v2230 = vadd.f32 %v2215, %v2224
        %v2231 = vadd.f32 %v2216, %v2224
        %v2232 = vadd.f32 %v2217, %v2224
        %v2233 = vadd.f32 %v2218, %v2224
        %2234 = vst [vmem:[%s244] sm:$0xff] %v2226
        %2235 = vst [vmem:[%s244 + $0x8] sm:$0xff] %v2227
        %2236 = vst [vmem:[%s244 + $0x10] sm:$0xff] %v2228
        %2237 = vst [vmem:[%s244 + $0x18] sm:$0xff] %v2229
        %2238 = vst [vmem:[%s244 + $0x20] sm:$0xff] %v2230
        %2239 = vst [vmem:[%s244 + $0x28] sm:$0xff] %v2231
        %2240 = vst [vmem:[%s244 + $0x30] sm:$0xff] %v2232
        %2241 = vst [vmem:[%s244 + $0x38] sm:$0xff] %v2233
        %s2242 = sand.u32 %s119, 1
        %s2243 = scalar_lea.sflag [#allocation8], %s2242
        %s2244 = sand.u32 %s119, 1
        %s2245 = smul.addr %s2244, 64
        %s2246 = scalar_lea.vmem [#allocation12], %s2245
        // Predicated region
        $region49: #{tpu_custom_call.1} parent=35 // pred_check
          %p2247 = pneg %p129
        $region50: #{tpu_custom_call.1} parent=35 // pred_check_branch
          %2249 = sbr.rel (%p2247) target = $region52
        $region51: #{tpu_custom_call.1} parent=35 // pred_region
          %s2251 = ssub.s32 1024, 1024
          %2252 = vsyncadd %s2243, %s2251
          %s2253 = smul.addr %s22, 8
          %s2254 = smul.addr %s2253, 128
          %s2255 = scalar_lea.hbm %s4, %s2254
          %s2256 = sshll.u32 %s2246, 4
          %s2257 = int_to_ptr.vmem [resolvable:$true] %s2256
          %2262 = dma.vmem_to_hbm [thread:$0]  %s2257, 1024, %s2255, %s2243, 128, 128, 8
        $region52: #{tpu_custom_call.1} parent=35 // pred_fallthru
          _
      $region36: #{tpu_custom_call.1} parent=5 // pred_fallthru
        _
      %p2263 = scmp.le.s32.totalorder 2, %s17
      // Predicated region
      $region53: #{tpu_custom_call.1} parent=5 // pred_check
        %p2264 = pneg %p2263
      $region54: #{tpu_custom_call.1} parent=5 // pred_check_branch
        %2266 = sbr.rel (%p2264) target = $region56
      $region55: #{tpu_custom_call.1} parent=5 // pred_region
        %s2267 = ssub.s32 %s17, 2
        // Predicated region
        $region57: #{tpu_custom_call.1} parent=55 // pred_check
          %p2268 = pneg %p135
        $region58: #{tpu_custom_call.1} parent=55 // pred_check_branch
          %2270 = sbr.rel (%p2268) target = $region60
        $region59: #{tpu_custom_call.1} parent=55 // pred_region
          %s2271 = sand.u32 %s120, 1
          %s2272 = scalar_lea.sflag [#allocation8], %s2271
          %s2273 = sand.u32 %s120, 1
          %s2274 = smul.addr %s2273, 64
          %s2275 = scalar_lea.vmem [#allocation12], %s2274
          %2276 = dma.done %s2272, 1024
        $region60: #{tpu_custom_call.1} parent=55 // pred_fallthru
          _
      $region56: #{tpu_custom_call.1} parent=5 // pred_fallthru
        _
    $region6: #{tpu_custom_call.1} parent=1 // loop_footer
      %s21 = sadd.s32 1, %s17
    $region7: #{tpu_custom_call.1} parent=1 // loop_footer_branch
      %16 = sbr.rel target = $region3
    $region8: #{tpu_custom_call.1} parent=1 // loop_exit
      _
    %2277 = vsyncpa [#allocation7], 1
    %s2278 = scalar_lea.sflag [#allocation7], 1
    %2279 = vsyncpa %s2278, 1
    %2280 = vsyncpa [#allocation10], 1
    %2281 = vsyncpa [#allocation8], 1
    %s2282 = scalar_lea.sflag [#allocation8], 1
    %2283 = vsyncpa %s2282, 1

</llo_original>
